<compile_context>
chip_gen: v7x
topology: tpu7x:2x2x1
jax: 0.10.0
libtpu: 0.0.40
codegen_flags: <defaults>
</compile_context>

<pallas_src>
import jax
import jax.numpy as jnp
from jax.experimental import pallas as pl
from jax.experimental.pallas import tpu as pltpu

DIM = 32            # embed dim
HEAD = 4            # number of heads
D_HEAD = DIM // HEAD
NEG_BIG = -1e10     # matches the module's -10000000000.0 mapping-mask bias
CROSS_BIG = -1e30   # cross-batch exclusion (<< NEG_BIG so it underflows even
                    # when every in-batch key of a query row is masked)


def local_mha_kernel(x_ref, bias_ref, mmflat_ref, mmbias_ref,
                     wqkv_ref, bqkv_ref, wo_ref, bo_ref,
                     out_ref, halt_ref):
    T, B, C = x_ref.shape
    H, D = HEAD, D_HEAD
    R = T * B                                    # flattened (t, b) row count

    # ---- fused QKV in-projection on one (T*B, C) slab: a single MXU push.
    x2d = x_ref[...].reshape(R, C)               # row r = t*B + b
    qkv = jnp.dot(x2d, wqkv_ref[...],
                  preferred_element_type=jnp.float32) + bqkv_ref[...]
    q_all = qkv[:, :C]                           # 1/sqrt(d) folded into wqkv/bqkv
    k_all = qkv[:, C:2 * C]
    v_all = qkv[:, 2 * C:]

    # ---- heads: H static lane slices + one stack (constant op count). (H,R,D)
    qh = jnp.stack([q_all[:, h * D:(h + 1) * D] for h in range(H)], axis=0)
    kh = jnp.stack([k_all[:, h * D:(h + 1) * D] for h in range(H)], axis=0)
    vh = jnp.stack([v_all[:, h * D:(h + 1) * D] for h in range(H)], axis=0)

    # ---- attention over all (query-row, key-row) pairs at once; the prepped
    #      additive bias makes cross-batch probabilities exactly 0 (exp
    #      underflow), so this equals per-batch attention.
    s = jnp.einsum('hqd,hkd->hqk', qh, kh,
                   preferred_element_type=jnp.float32)            # (H, R, R)
    s = s + bias_ref[...][None]
    s = s - jnp.max(s, axis=-1, keepdims=True)
    e = jnp.exp(s)
    p = e * pl.reciprocal(jnp.sum(e, axis=-1, keepdims=True), approx=True)

    ctx_h = jnp.einsum('hqk,hkd->hqd', p, vh,
                       preferred_element_type=jnp.float32)        # (H, R, D)
    ctx = jnp.concatenate([ctx_h[h] for h in range(H)], axis=-1)  # (R, C)

    # ---- out-projection; rows are already (t, b)-ordered == (T, B, C) layout,
    #      so the output needs no transpose in kernel or wrapper.
    out2d = jnp.dot(ctx, wo_ref[...],
                    preferred_element_type=jnp.float32) + bo_ref[...]
    out_ref[...] = out2d.reshape(T, B, C)

    # ---- halting score: head-averaged weights summed over queries, then a
    #      masked softmax over segments (flattened; cross-batch terms are 0).
    mmf = mmflat_ref[...]                                         # (B*M, R)
    w_avg = jnp.mean(p, axis=0)                                   # (R, R)
    col = jnp.sum(w_avg, axis=0, keepdims=True)                   # (1, R)
    z = col * mmf + mmbias_ref[...]
    z = z - jnp.max(z, axis=-1, keepdims=True)
    ez = jnp.exp(z)
    sm = ez * pl.reciprocal(jnp.sum(ez, axis=-1, keepdims=True),
                            approx=True) * mmf
    halt = jnp.sum(sm, axis=0, keepdims=True)                     # (1, R)
    # single lane-dense store (padded to a multiple of 128 lanes)
    pad = halt_ref.shape[1] - R
    halt_ref[...] = jnp.concatenate(
        [halt, jnp.zeros((1, pad), jnp.float32)], axis=-1)


def prepare_masks(attn_mask, mappingmask):
    """One-time mask prep (amortize across layers / decode steps).

    Returns operands in the kernel's flattened (t, b) row/key order:
      attn_bias: (T*B, T*B)  additive score bias
                 (in-batch masked key -> NEG_BIG, cross-batch pair -> CROSS_BIG)
      mm_flat:   (B*M, T*B)  mappingmask scattered onto the flattened key axis
      mm_bias:   (B*M, T*B)  (1 - mm_flat) * NEG_BIG
    """
    B, T, _ = attn_mask.shape
    mask = jnp.where(attn_mask > 0, 1.0, 0.0).astype(jnp.float32)
    eye = jnp.eye(B, dtype=jnp.float32)

    # bias4[t, b, t2, b2]
    m4 = jnp.broadcast_to(jnp.transpose(mask, (1, 0, 2))[:, :, :, None],
                          (T, B, T, B))
    same = jnp.broadcast_to(eye[None, :, None, :], (T, B, T, B))
    attn_bias = (same * m4 * NEG_BIG
                 + (1.0 - same) * CROSS_BIG).reshape(T * B, T * B)

    mm = mappingmask.astype(jnp.float32)
    mm_flat = (mm[:, :, :, None] * eye[:, None, None, :]).reshape(-1, T * B)
    mm_bias = (1.0 - mm_flat) * NEG_BIG
    return attn_bias, mm_flat, mm_bias


def local_mha_forward(x_tbc, masks, kparams):
    T, B, C = x_tbc.shape
    attn_bias, mm_flat, mm_bias = masks
    R = T * B
    BM = mm_flat.shape[0]
    halt_lanes = max(128, ((R + 127) // 128) * 128)

    grid_spec = pltpu.PrefetchScalarGridSpec(
        num_scalar_prefetch=0,
        grid=(1,),                                 # single step: all VMEM-resident
        in_specs=[
            pl.BlockSpec((T, B, C), lambda i: (0, 0, 0)),      # x, native layout
            pl.BlockSpec((R, R), lambda i: (0, 0)),            # attention bias
            pl.BlockSpec((BM, R), lambda i: (0, 0)),           # mapping mask (flat)
            pl.BlockSpec((BM, R), lambda i: (0, 0)),           # mapping bias (flat)
            pl.BlockSpec((C, 3 * C), lambda i: (0, 0)),        # fused [Wq|Wk|Wv]^T
            pl.BlockSpec((1, 3 * C), lambda i: (0, 0)),        # fused [bq|bk|bv]
            pl.BlockSpec((C, C), lambda i: (0, 0)),            # Wo^T
            pl.BlockSpec((1, C), lambda i: (0, 0)),            # bo
        ],
        out_specs=[
            pl.BlockSpec((T, B, C), lambda i: (0, 0, 0)),      # attention output
            pl.BlockSpec((1, halt_lanes), lambda i: (0, 0)),   # halting, lane-padded
        ],
    )

    attn_out, halt_pad = pl.pallas_call(
        local_mha_kernel,
        out_shape=(jax.ShapeDtypeStruct((T, B, C), jnp.float32),
                   jax.ShapeDtypeStruct((1, halt_lanes), jnp.float32)),
        grid_spec=grid_spec,
        compiler_params=pltpu.CompilerParams(
            dimension_semantics=("arbitrary",)),
    )(x_tbc, attn_bias, mm_flat, mm_bias,
      kparams["wqkv"], kparams["bqkv"], kparams["wo_t"], kparams["bo"])

    # 64-byte fixup: flattened (t, b)-ordered halting vector -> (B, T).
    halting = halt_pad[0, :R].reshape(T, B).T
    return attn_out, halting


def init_params(key, dim):
    # Deterministic synthetic init mirroring nn.MultiheadAttention shapes:
    #   in_proj_weight (3*dim, dim), in_proj_bias (3*dim,)
    #   out_proj.weight (dim, dim),  out_proj.bias (dim,)
    ks = jax.random.split(key, 3)
    in_w = jax.random.normal(ks[0], (3 * dim, dim), jnp.float32) / jnp.sqrt(dim)
    in_b = jax.random.normal(ks[1], (3 * dim,), jnp.float32) * 0.02
    out_w = jax.random.normal(ks[2], (dim, dim), jnp.float32) / jnp.sqrt(dim)
    out_b = jnp.zeros((dim,), jnp.float32)
    wq, wk, wv = in_w[:dim], in_w[dim:2 * dim], in_w[2 * dim:]
    bq, bk, bv = in_b[:dim], in_b[dim:2 * dim], in_b[2 * dim:]
    return dict(
        wq_t=wq.T, wk_t=wk.T, wv_t=wv.T, wo_t=out_w.T,
        bq=bq.reshape(1, dim), bk=bk.reshape(1, dim),
        bv=bv.reshape(1, dim), bo=out_b.reshape(1, dim),
    )


def prepare_kernel_params(params):
    # One-time host-side prep: fuse QKV weights/biases into single operands and
    # fold the 1/sqrt(d_head) query scale into the Q block (zero in-kernel cost).
    scale = D_HEAD ** -0.5
    wqkv = jnp.concatenate(
        [params["wq_t"] * scale, params["wk_t"], params["wv_t"]], axis=1)
    bqkv = jnp.concatenate(
        [params["bq"] * scale, params["bk"], params["bv"]], axis=1)
    return dict(wqkv=wqkv, bqkv=bqkv, wo_t=params["wo_t"], bo=params["bo"])


def reference(x_tbc, attn_mask, mm, params):
    # Pure-JAX reference replicating the PyTorch forward pass.
    x = jnp.transpose(x_tbc, (1, 0, 2))
    B, T, C = x.shape
    q = (x @ params["wq_t"] + params["bq"]) * (D_HEAD ** -0.5)
    k = x @ params["wk_t"] + params["bk"]
    v = x @ params["wv_t"] + params["bv"]

    def heads(a):
        return a.reshape(B, T, HEAD, D_HEAD).transpose(0, 2, 1, 3)

    qh, kh, vh = heads(q), heads(k), heads(v)
    s = jnp.einsum("bhqd,bhkd->bhqk", qh, kh)
    s = jnp.where(attn_mask[:, None] > 0.5, -jnp.inf, s)
    p = jax.nn.softmax(s, axis=-1)
    ctx = jnp.einsum("bhqk,bhkd->bhqd", p, vh).transpose(0, 2, 1, 3).reshape(B, T, C)
    out = ctx @ params["wo_t"] + params["bo"]
    w_avg = p.mean(axis=1)                    # head-averaged weights (B, T, T)
    col = w_avg.sum(axis=1)                   # sum over query dim -> (B, T)
    hs = col[:, None, :] * mm
    mask3 = (1.0 - mm) * NEG_BIG
    sm = jax.nn.softmax(hs + mask3, axis=-1) * mm
    sm = jnp.where(jnp.isnan(sm), jnp.zeros_like(sm), sm)
    return jnp.transpose(out, (1, 0, 2)), sm.sum(axis=1)


if __name__ == "__main__":
    B, T, M = 2, 8, 4
    key = jax.random.PRNGKey(0)
    k_x, k_p = jax.random.split(key)

    x = jax.random.normal(k_x, (T, B, DIM), jnp.float32)

    # Padding-style attention mask: batch 0 full length, batch 1 has 6 valid frames.
    lens = [T, 6]
    attn_mask = jnp.zeros((B, T, T), jnp.float32)
    for b in range(B):
        attn_mask = attn_mask.at[b, :, lens[b]:].set(1.0)   # mask padded keys

    # Mapping mask: M segments of 2 frames each (padded frames excluded).
    mappingmask = jnp.zeros((B, M, T), jnp.float32)
    for b in range(B):
        for s in range(M):
            for tt in range(2 * s, 2 * s + 2):
                if tt < lens[b]:
                    mappingmask = mappingmask.at[b, s, tt].set(1.0)

    params = init_params(k_p, DIM)
    kparams = prepare_kernel_params(params)
    masks = prepare_masks(attn_mask, mappingmask)   # one-time, amortizable prep

    attn_out, halting = local_mha_forward(x, masks, kparams)
    jax.block_until_ready((attn_out, halting))

    ref_out, ref_halt = reference(x, attn_mask, mappingmask, params)
    assert attn_out.shape == (T, B, DIM) and halting.shape == (B, T)
    # Tolerance is looser than f32 eps only because the softmax normalizations
    # use pl.reciprocal(approx=True) (EUP fast path, ~1e-4 relative error).
    assert jnp.allclose(attn_out, ref_out, atol=5e-3, rtol=5e-3)
    assert jnp.allclose(halting, ref_halt, atol=5e-3, rtol=5e-3)
    print("KERNEL_OK")
</pallas_src>

<mosaic_0001>
module attributes {stable_mosaic.version = 11 : i64} {
  func.func @local_mha_kernel(%arg0: i32, %arg1: memref<8x2x32xf32, #tpu.memory_space<vmem>>, %arg2: memref<16x16xf32, #tpu.memory_space<vmem>>, %arg3: memref<8x16xf32, #tpu.memory_space<vmem>>, %arg4: memref<8x16xf32, #tpu.memory_space<vmem>>, %arg5: memref<32x96xf32, #tpu.memory_space<vmem>>, %arg6: memref<1x96xf32, #tpu.memory_space<vmem>>, %arg7: memref<32x32xf32, #tpu.memory_space<vmem>>, %arg8: memref<1x32xf32, #tpu.memory_space<vmem>>, %arg9: memref<8x2x32xf32, #tpu.memory_space<vmem>>, %arg10: memref<1x128xf32, #tpu.memory_space<vmem>>) attributes {dimension_semantics = [#tpu.dimension_semantics<arbitrary>], iteration_bounds = array<i64: 1>, scalar_prefetch = 0 : i64, scratch_operands = 0 : i64, tpu.core_type = #tpu.core_type<tc>, window_params = [{pipeline_mode = #tpu.pipeline_mode<synchronous>, transform_indices = @transform_0, window_bounds = array<i64: 8, 2, 32>}, {pipeline_mode = #tpu.pipeline_mode<synchronous>, transform_indices = @transform_1, window_bounds = array<i64: 16, 16>}, {pipeline_mode = #tpu.pipeline_mode<synchronous>, transform_indices = @transform_2, window_bounds = array<i64: 8, 16>}, {pipeline_mode = #tpu.pipeline_mode<synchronous>, transform_indices = @transform_3, window_bounds = array<i64: 8, 16>}, {pipeline_mode = #tpu.pipeline_mode<synchronous>, transform_indices = @transform_4, window_bounds = array<i64: 32, 96>}, {pipeline_mode = #tpu.pipeline_mode<synchronous>, transform_indices = @transform_5, window_bounds = array<i64: 1, 96>}, {pipeline_mode = #tpu.pipeline_mode<synchronous>, transform_indices = @transform_6, window_bounds = array<i64: 32, 32>}, {pipeline_mode = #tpu.pipeline_mode<synchronous>, transform_indices = @transform_7, window_bounds = array<i64: 1, 32>}, {pipeline_mode = #tpu.pipeline_mode<synchronous>, transform_indices = @transform_8, window_bounds = array<i64: 8, 2, 32>}, {pipeline_mode = #tpu.pipeline_mode<synchronous>, transform_indices = @transform_9, window_bounds = array<i64: 1, 128>}]} {
    %c0 = arith.constant 0 : index
    %c0_0 = arith.constant 0 : index
    %c0_1 = arith.constant 0 : index
    %0 = vector.load %arg1[%c0, %c0_0, %c0_1] : memref<8x2x32xf32, #tpu.memory_space<vmem>>, vector<8x2x32xf32>
    %1 = vector.shape_cast %0 : vector<8x2x32xf32> to vector<16x32xf32>
    %c0_2 = arith.constant 0 : index
    %c0_3 = arith.constant 0 : index
    %2 = vector.load %arg5[%c0_2, %c0_3] : memref<32x96xf32, #tpu.memory_space<vmem>>, vector<32x96xf32>
    %cst = arith.constant dense<0.000000e+00> : vector<16x96xf32>
    %3 = tpu.matmul %1, %2, %cst {dimension_numbers = #tpu.dot_dimension_numbers<[1], [0], [0], [1], [0, 0, 1, 1], [], []>} : vector<16x32xf32>, vector<32x96xf32>, vector<16x96xf32> -> vector<16x96xf32>
    %c0_4 = arith.constant 0 : index
    %c0_5 = arith.constant 0 : index
    %4 = vector.load %arg6[%c0_4, %c0_5] : memref<1x96xf32, #tpu.memory_space<vmem>>, vector<1x96xf32>
    %5 = vector.broadcast %4 : vector<1x96xf32> to vector<16x96xf32>
    %6 = arith.addf %3, %5 : vector<16x96xf32>
    %7 = vector.extract_strided_slice %6 {offsets = [0, 0], sizes = [16, 32], strides = [1, 1]} : vector<16x96xf32> to vector<16x32xf32>
    %8 = vector.extract_strided_slice %6 {offsets = [0, 32], sizes = [16, 32], strides = [1, 1]} : vector<16x96xf32> to vector<16x32xf32>
    %9 = vector.extract_strided_slice %6 {offsets = [0, 64], sizes = [16, 32], strides = [1, 1]} : vector<16x96xf32> to vector<16x32xf32>
    %10 = vector.extract_strided_slice %7 {offsets = [0, 0], sizes = [16, 8], strides = [1, 1]} : vector<16x32xf32> to vector<16x8xf32>
    %11 = vector.extract_strided_slice %7 {offsets = [0, 8], sizes = [16, 8], strides = [1, 1]} : vector<16x32xf32> to vector<16x8xf32>
    %12 = vector.extract_strided_slice %7 {offsets = [0, 16], sizes = [16, 8], strides = [1, 1]} : vector<16x32xf32> to vector<16x8xf32>
    %13 = vector.extract_strided_slice %7 {offsets = [0, 24], sizes = [16, 8], strides = [1, 1]} : vector<16x32xf32> to vector<16x8xf32>
    %14 = vector.shape_cast %10 : vector<16x8xf32> to vector<1x16x8xf32>
    %15 = vector.shape_cast %11 : vector<16x8xf32> to vector<1x16x8xf32>
    %16 = vector.shape_cast %12 : vector<16x8xf32> to vector<1x16x8xf32>
    %17 = vector.shape_cast %13 : vector<16x8xf32> to vector<1x16x8xf32>
    %18 = tpu.concatenate %14, %15, %16, %17 in 0 : vector<1x16x8xf32>, vector<1x16x8xf32>, vector<1x16x8xf32>, vector<1x16x8xf32> -> vector<4x16x8xf32>
    %19 = vector.extract_strided_slice %8 {offsets = [0, 0], sizes = [16, 8], strides = [1, 1]} : vector<16x32xf32> to vector<16x8xf32>
    %20 = vector.extract_strided_slice %8 {offsets = [0, 8], sizes = [16, 8], strides = [1, 1]} : vector<16x32xf32> to vector<16x8xf32>
    %21 = vector.extract_strided_slice %8 {offsets = [0, 16], sizes = [16, 8], strides = [1, 1]} : vector<16x32xf32> to vector<16x8xf32>
    %22 = vector.extract_strided_slice %8 {offsets = [0, 24], sizes = [16, 8], strides = [1, 1]} : vector<16x32xf32> to vector<16x8xf32>
    %23 = vector.shape_cast %19 : vector<16x8xf32> to vector<1x16x8xf32>
    %24 = vector.shape_cast %20 : vector<16x8xf32> to vector<1x16x8xf32>
    %25 = vector.shape_cast %21 : vector<16x8xf32> to vector<1x16x8xf32>
    %26 = vector.shape_cast %22 : vector<16x8xf32> to vector<1x16x8xf32>
    %27 = tpu.concatenate %23, %24, %25, %26 in 0 : vector<1x16x8xf32>, vector<1x16x8xf32>, vector<1x16x8xf32>, vector<1x16x8xf32> -> vector<4x16x8xf32>
    %28 = vector.extract_strided_slice %9 {offsets = [0, 0], sizes = [16, 8], strides = [1, 1]} : vector<16x32xf32> to vector<16x8xf32>
    %29 = vector.extract_strided_slice %9 {offsets = [0, 8], sizes = [16, 8], strides = [1, 1]} : vector<16x32xf32> to vector<16x8xf32>
    %30 = vector.extract_strided_slice %9 {offsets = [0, 16], sizes = [16, 8], strides = [1, 1]} : vector<16x32xf32> to vector<16x8xf32>
    %31 = vector.extract_strided_slice %9 {offsets = [0, 24], sizes = [16, 8], strides = [1, 1]} : vector<16x32xf32> to vector<16x8xf32>
    %32 = vector.shape_cast %28 : vector<16x8xf32> to vector<1x16x8xf32>
    %33 = vector.shape_cast %29 : vector<16x8xf32> to vector<1x16x8xf32>
    %34 = vector.shape_cast %30 : vector<16x8xf32> to vector<1x16x8xf32>
    %35 = vector.shape_cast %31 : vector<16x8xf32> to vector<1x16x8xf32>
    %36 = tpu.concatenate %32, %33, %34, %35 in 0 : vector<1x16x8xf32>, vector<1x16x8xf32>, vector<1x16x8xf32>, vector<1x16x8xf32> -> vector<4x16x8xf32>
    "tpu.trace_start"() <{level = 10 : i32, message = "hqd,hkd->hqk"}> : () -> ()
    %cst_6 = arith.constant dense<0.000000e+00> : vector<4x16x16xf32>
    %37 = tpu.matmul %18, %27, %cst_6 {dimension_numbers = #tpu.dot_dimension_numbers<[2], [2], [1], [1], [0, 0, 0, 1, 1, 1], [0], [0]>} : vector<4x16x8xf32>, vector<4x16x8xf32>, vector<4x16x16xf32> -> vector<4x16x16xf32>
    "tpu.trace_stop"() : () -> ()
    %c0_7 = arith.constant 0 : index
    %c0_8 = arith.constant 0 : index
    %38 = vector.load %arg2[%c0_7, %c0_8] : memref<16x16xf32, #tpu.memory_space<vmem>>, vector<16x16xf32>
    %39 = vector.shape_cast %38 : vector<16x16xf32> to vector<1x16x16xf32>
    %40 = vector.broadcast %39 : vector<1x16x16xf32> to vector<4x16x16xf32>
    %41 = arith.addf %37, %40 : vector<4x16x16xf32>
    %cst_9 = arith.constant dense<0xFF800000> : vector<4x16xf32>
    %42 = vector.multi_reduction <maximumf>, %41, %cst_9 [2] : vector<4x16x16xf32> to vector<4x16xf32>
    %43 = vector.shape_cast %42 : vector<4x16xf32> to vector<4x16x1xf32>
    %44 = vector.broadcast %43 : vector<4x16x1xf32> to vector<4x16x16xf32>
    %45 = arith.subf %41, %44 : vector<4x16x16xf32>
    %46 = math.exp %45 : vector<4x16x16xf32>
    %cst_10 = arith.constant dense<0.000000e+00> : vector<4x16xf32>
    %47 = vector.multi_reduction <add>, %46, %cst_10 [2] : vector<4x16x16xf32> to vector<4x16xf32>
    %48 = vector.shape_cast %47 : vector<4x16xf32> to vector<4x16x1xf32>
    %49 = tpu.reciprocal %48 {approx = true} : vector<4x16x1xf32> -> vector<4x16x1xf32>
    %50 = vector.broadcast %49 : vector<4x16x1xf32> to vector<4x16x16xf32>
    %51 = arith.mulf %46, %50 : vector<4x16x16xf32>
    "tpu.trace_start"() <{level = 10 : i32, message = "hqk,hkd->hqd"}> : () -> ()
    %cst_11 = arith.constant dense<0.000000e+00> : vector<4x16x8xf32>
    %52 = tpu.matmul %51, %36, %cst_11 {dimension_numbers = #tpu.dot_dimension_numbers<[2], [1], [1], [2], [0, 0, 0, 1, 1, 2], [0], [0]>} : vector<4x16x16xf32>, vector<4x16x8xf32>, vector<4x16x8xf32> -> vector<4x16x8xf32>
    "tpu.trace_stop"() : () -> ()
    %53 = vector.extract_strided_slice %52 {offsets = [0, 0, 0], sizes = [1, 16, 8], strides = [1, 1, 1]} : vector<4x16x8xf32> to vector<1x16x8xf32>
    %54 = vector.shape_cast %53 : vector<1x16x8xf32> to vector<16x8xf32>
    %55 = vector.extract_strided_slice %52 {offsets = [1, 0, 0], sizes = [1, 16, 8], strides = [1, 1, 1]} : vector<4x16x8xf32> to vector<1x16x8xf32>
    %56 = vector.shape_cast %55 : vector<1x16x8xf32> to vector<16x8xf32>
    %57 = vector.extract_strided_slice %52 {offsets = [2, 0, 0], sizes = [1, 16, 8], strides = [1, 1, 1]} : vector<4x16x8xf32> to vector<1x16x8xf32>
    %58 = vector.shape_cast %57 : vector<1x16x8xf32> to vector<16x8xf32>
    %59 = vector.extract_strided_slice %52 {offsets = [3, 0, 0], sizes = [1, 16, 8], strides = [1, 1, 1]} : vector<4x16x8xf32> to vector<1x16x8xf32>
    %60 = vector.shape_cast %59 : vector<1x16x8xf32> to vector<16x8xf32>
    %61 = tpu.concatenate %54, %56, %58, %60 in 1 : vector<16x8xf32>, vector<16x8xf32>, vector<16x8xf32>, vector<16x8xf32> -> vector<16x32xf32>
    %c0_12 = arith.constant 0 : index
    %c0_13 = arith.constant 0 : index
    %62 = vector.load %arg7[%c0_12, %c0_13] : memref<32x32xf32, #tpu.memory_space<vmem>>, vector<32x32xf32>
    %cst_14 = arith.constant dense<0.000000e+00> : vector<16x32xf32>
    %63 = tpu.matmul %61, %62, %cst_14 {dimension_numbers = #tpu.dot_dimension_numbers<[1], [0], [0], [1], [0, 0, 1, 1], [], []>} : vector<16x32xf32>, vector<32x32xf32>, vector<16x32xf32> -> vector<16x32xf32>
    %c0_15 = arith.constant 0 : index
    %c0_16 = arith.constant 0 : index
    %64 = vector.load %arg8[%c0_15, %c0_16] : memref<1x32xf32, #tpu.memory_space<vmem>>, vector<1x32xf32>
    %65 = vector.broadcast %64 : vector<1x32xf32> to vector<16x32xf32>
    %66 = arith.addf %63, %65 : vector<16x32xf32>
    %67 = vector.shape_cast %66 : vector<16x32xf32> to vector<8x2x32xf32>
    %c0_17 = arith.constant 0 : index
    %c0_18 = arith.constant 0 : index
    %c0_19 = arith.constant 0 : index
    %68 = vector.load %arg9[%c0_17, %c0_18, %c0_19] : memref<8x2x32xf32, #tpu.memory_space<vmem>>, vector<8x2x32xf32>
    tpu.vector_store %arg9[%c0_17, %c0_18, %c0_19], %67 {strides = array<i32>} : memref<8x2x32xf32, #tpu.memory_space<vmem>>, vector<8x2x32xf32>,
    %c0_20 = arith.constant 0 : index
    %c0_21 = arith.constant 0 : index
    %69 = vector.load %arg3[%c0_20, %c0_21] : memref<8x16xf32, #tpu.memory_space<vmem>>, vector<8x16xf32>
    %cst_22 = arith.constant dense<0.000000e+00> : vector<16x16xf32>
    %70 = vector.multi_reduction <add>, %51, %cst_22 [0] : vector<4x16x16xf32> to vector<16x16xf32>
    %cst_23 = arith.constant 4.000000e+00 : f32
    %71 = vector.broadcast %cst_23 : f32 to vector<16x16xf32>
    %72 = arith.divf %70, %71 : vector<16x16xf32>
    %cst_24 = arith.constant dense<0.000000e+00> : vector<16xf32>
    %73 = vector.multi_reduction <add>, %72, %cst_24 [0] : vector<16x16xf32> to vector<16xf32>
    %74 = vector.shape_cast %73 : vector<16xf32> to vector<1x16xf32>
    %75 = vector.broadcast %74 : vector<1x16xf32> to vector<8x16xf32>
    %76 = arith.mulf %75, %69 : vector<8x16xf32>
    %c0_25 = arith.constant 0 : index
    %c0_26 = arith.constant 0 : index
    %77 = vector.load %arg4[%c0_25, %c0_26] : memref<8x16xf32, #tpu.memory_space<vmem>>, vector<8x16xf32>
    %78 = arith.addf %76, %77 : vector<8x16xf32>
    %cst_27 = arith.constant dense<0xFF800000> : vector<8xf32>
    %79 = vector.multi_reduction <maximumf>, %78, %cst_27 [1] : vector<8x16xf32> to vector<8xf32>
    %80 = vector.shape_cast %79 : vector<8xf32> to vector<8x1xf32>
    %81 = vector.broadcast %80 : vector<8x1xf32> to vector<8x16xf32>
    %82 = arith.subf %78, %81 : vector<8x16xf32>
    %83 = math.exp %82 : vector<8x16xf32>
    %cst_28 = arith.constant dense<0.000000e+00> : vector<8xf32>
    %84 = vector.multi_reduction <add>, %83, %cst_28 [1] : vector<8x16xf32> to vector<8xf32>
    %85 = vector.shape_cast %84 : vector<8xf32> to vector<8x1xf32>
    %86 = tpu.reciprocal %85 {approx = true} : vector<8x1xf32> -> vector<8x1xf32>
    %87 = vector.broadcast %86 : vector<8x1xf32> to vector<8x16xf32>
    %88 = arith.mulf %83, %87 : vector<8x16xf32>
    %89 = arith.mulf %88, %69 : vector<8x16xf32>
    %cst_29 = arith.constant dense<0.000000e+00> : vector<16xf32>
    %90 = vector.multi_reduction <add>, %89, %cst_29 [0] : vector<8x16xf32> to vector<16xf32>
    %91 = vector.shape_cast %90 : vector<16xf32> to vector<1x16xf32>
    %cst_30 = arith.constant 0.000000e+00 : f32
    %92 = vector.broadcast %cst_30 : f32 to vector<1x112xf32>
    %93 = tpu.concatenate %91, %92 in 1 : vector<1x16xf32>, vector<1x112xf32> -> vector<1x128xf32>
    %c0_31 = arith.constant 0 : index
    %c0_32 = arith.constant 0 : index
    %94 = vector.load %arg10[%c0_31, %c0_32] : memref<1x128xf32, #tpu.memory_space<vmem>>, vector<1x128xf32>
    tpu.vector_store %arg10[%c0_31, %c0_32], %93 {strides = array<i32>} : memref<1x128xf32, #tpu.memory_space<vmem>>, vector<1x128xf32>,
    return
  }
  func.func @transform_0(%arg0: i32) -> (i32, i32, i32) {
    %c0_i32 = arith.constant 0 : i32
    %c0_i32_0 = arith.constant 0 : i32
    %c0_i32_1 = arith.constant 0 : i32
    %c0_i32_2 = arith.constant 0 : i32
    return %c0_i32, %c0_i32_0, %c0_i32_1 : i32, i32, i32
  }
  func.func @transform_1(%arg0: i32) -> (i32, i32) {
    %c0_i32 = arith.constant 0 : i32
    %c0_i32_0 = arith.constant 0 : i32
    %c0_i32_1 = arith.constant 0 : i32
    return %c0_i32, %c0_i32_0 : i32, i32
  }
  func.func @transform_2(%arg0: i32) -> (i32, i32) {
    %c0_i32 = arith.constant 0 : i32
    %c0_i32_0 = arith.constant 0 : i32
    %c0_i32_1 = arith.constant 0 : i32
    return %c0_i32, %c0_i32_0 : i32, i32
  }
  func.func @transform_3(%arg0: i32) -> (i32, i32) {
    %c0_i32 = arith.constant 0 : i32
    %c0_i32_0 = arith.constant 0 : i32
    %c0_i32_1 = arith.constant 0 : i32
    return %c0_i32, %c0_i32_0 : i32, i32
  }
  func.func @transform_4(%arg0: i32) -> (i32, i32) {
    %c0_i32 = arith.constant 0 : i32
    %c0_i32_0 = arith.constant 0 : i32
    %c0_i32_1 = arith.constant 0 : i32
    return %c0_i32, %c0_i32_0 : i32, i32
  }
  func.func @transform_5(%arg0: i32) -> (i32, i32) {
    %c0_i32 = arith.constant 0 : i32
    %c0_i32_0 = arith.constant 0 : i32
    %c0_i32_1 = arith.constant 0 : i32
    return %c0_i32, %c0_i32_0 : i32, i32
  }
  func.func @transform_6(%arg0: i32) -> (i32, i32) {
    %c0_i32 = arith.constant 0 : i32
    %c0_i32_0 = arith.constant 0 : i32
    %c0_i32_1 = arith.constant 0 : i32
    return %c0_i32, %c0_i32_0 : i32, i32
  }
  func.func @transform_7(%arg0: i32) -> (i32, i32) {
    %c0_i32 = arith.constant 0 : i32
    %c0_i32_0 = arith.constant 0 : i32
    %c0_i32_1 = arith.constant 0 : i32
    return %c0_i32, %c0_i32_0 : i32, i32
  }
  func.func @transform_8(%arg0: i32) -> (i32, i32, i32) {
    %c0_i32 = arith.constant 0 : i32
    %c0_i32_0 = arith.constant 0 : i32
    %c0_i32_1 = arith.constant 0 : i32
    %c0_i32_2 = arith.constant 0 : i32
    return %c0_i32, %c0_i32_0, %c0_i32_1 : i32, i32, i32
  }
  func.func @transform_9(%arg0: i32) -> (i32, i32) {
    %c0_i32 = arith.constant 0 : i32
    %c0_i32_0 = arith.constant 0 : i32
    %c0_i32_1 = arith.constant 0 : i32
    return %c0_i32, %c0_i32_0 : i32, i32
  }
}

</mosaic_0001>

<llo_original>
// kernel: tpu_custom_call.1
$region0: #{tpu_custom_call.1}
  #allocation0 [shape = 'u32[]', space=smem, size = 0x4, offset = 0x4, fixed_abs, tag = 'smem constant byte address 0x4 - core index']
  #allocation1 [shape = 'u32[144,128]{1,0:T(1,128)}', space=vmem, size = 0x12000, scoped, tag = 'internal scratch']
  %s0 = inlined_call_operand.hbm [shape: f32[8,2,32], index: 0, kind: input, shape index: {}]
  %s1 = inlined_call_operand.hbm [shape: f32[16,16], index: 1, kind: input, shape index: {}]
  %s2 = inlined_call_operand.hbm [shape: f32[8,16], index: 2, kind: input, shape index: {}]
  %s3 = inlined_call_operand.vmem [shape: f32[8,16], index: 3, kind: input, shape index: {}]
  %s4 = inlined_call_operand.hbm [shape: f32[32,96], index: 4, kind: input, shape index: {}]
  %s5 = inlined_call_operand.vmem [shape: f32[1,96], index: 5, kind: input, shape index: {}]
  %s6 = inlined_call_operand.hbm [shape: f32[32,32], index: 6, kind: input, shape index: {}]
  %s7 = inlined_call_operand.vmem [shape: f32[1,32], index: 7, kind: input, shape index: {}]
  %s8 = inlined_call_operand.hbm [shape: f32[8,2,32], index: 8, kind: output, shape index: {0}]
  %s9 = inlined_call_operand.hbm [shape: f32[1,128], index: 9, kind: output, shape index: {1}]
  %10 = xla_tuple %s8, %s9
  %s11 = sld [smem:[#allocation0]]
  $region70: #{tpu_custom_call.1} parent=0
    _
  %s13 = ssub.s32 1, %s11
  %s14 = scalar_select 0, %s13, %s11
  $region1: #{tpu_custom_call.1} parent=0
    #allocation2 [shape = 'u8[8192]{0}', space=vmem, size = 0x2000, scoped, tag = 'input window, operand 0, single buffered']
    #allocation3 [shape = 's32[1]{0}', space=sflag, size = 0x4, scoped, tag = 'scoped memory for tpu_custom_call.1']
    #allocation4 [shape = 's32[1]{0}', space=sflag, size = 0x4, scoped, tag = 'scoped memory for tpu_custom_call.1']
    #allocation5 [shape = 'u8[8192]{0}', space=vmem, size = 0x2000, scoped, tag = 'input window, operand 1, single buffered']
    #allocation6 [shape = 's32[1]{0}', space=sflag, size = 0x4, scoped, tag = 'scoped memory for tpu_custom_call.1']
    #allocation7 [shape = 'u8[4096]{0}', space=vmem, size = 0x1000, scoped, tag = 'input window, operand 2, single buffered']
    #allocation8 [shape = 'u8[16384]{0}', space=vmem, size = 0x4000, scoped, tag = 'input window, operand 4, single buffered']
    #allocation9 [shape = 's32[1]{0}', space=sflag, size = 0x4, scoped, tag = 'scoped memory for tpu_custom_call.1']
    #allocation10 [shape = 'u8[16384]{0}', space=vmem, size = 0x4000, scoped, tag = 'input window, operand 6, single buffered']
    #allocation11 [shape = 'u8[8192]{0}', space=vmem, size = 0x2000, scoped, tag = 'output window, operand 0, single buffered']
    #allocation12 [shape = 'u8[512]{0}', space=vmem, size = 0x400, scoped, tag = 'output window, operand 1, single buffered']
    #allocation13 [shape = 's32[1]{0}', space=sflag, size = 0x4, scoped, tag = 'scoped memory for tpu_custom_call.1']
    %15 = vsyncpa [#allocation3], 0
    %16 = vsyncpa [#allocation6], 0
    %17 = vsyncpa [#allocation9], 0
    %18 = vsyncpa [#allocation4], 0
    %19 = vsyncpa [#allocation13], 0
    // Predicated region
    $region2: #{tpu_custom_call.1} parent=1 // pred_check
      _
    $region3: #{tpu_custom_call.1} parent=1 // pred_check_branch
      %21 = sbr.rel (0) target = $region5
    $region4: #{tpu_custom_call.1} parent=1 // pred_region
      %s23 = ssub.s32 256, 256
      %24 = vsyncadd [#allocation3], %s23
      %s25 = sshll.u32 [#allocation2], 4
      %s26 = int_to_ptr.vmem [resolvable:$true] %s25
      %31 = dma.hbm_to_vmem [thread:$0]  %s0, 256, %s26, [#allocation3], 32, 32, 2
    $region5: #{tpu_custom_call.1} parent=1 // pred_fallthru
      _
    // Predicated region
    $region6: #{tpu_custom_call.1} parent=1 // pred_check
      _
    $region7: #{tpu_custom_call.1} parent=1 // pred_check_branch
      %33 = sbr.rel (0) target = $region9
    $region8: #{tpu_custom_call.1} parent=1 // pred_region
      %s35 = ssub.s32 256, 256
      %36 = vsyncadd [#allocation6], %s35
      %s37 = sshll.u32 [#allocation5], 4
      %s38 = int_to_ptr.vmem [resolvable:$true] %s37
      %43 = dma.hbm_to_vmem [thread:$0]  %s1, 256, %s38, [#allocation6], 128, 128, 8
    $region9: #{tpu_custom_call.1} parent=1 // pred_fallthru
      _
    // Predicated region
    $region10: #{tpu_custom_call.1} parent=1 // pred_check
      _
    $region11: #{tpu_custom_call.1} parent=1 // pred_check_branch
      %45 = sbr.rel (0) target = $region13
    $region12: #{tpu_custom_call.1} parent=1 // pred_region
      %s47 = ssub.s32 128, 128
      %48 = vsyncadd [#allocation6], %s47
      %s50 = sshll.u32 [#allocation7], 4
      %s51 = int_to_ptr.vmem [resolvable:$true] %s50
      %53 = dma.hbm_to_vmem [thread:$0]  %s2, 128, %s51, [#allocation6]
    $region13: #{tpu_custom_call.1} parent=1 // pred_fallthru
      _
    // Predicated region
    $region14: #{tpu_custom_call.1} parent=1 // pred_check
      _
    $region15: #{tpu_custom_call.1} parent=1 // pred_check_branch
      %55 = sbr.rel (0) target = $region17
    $region16: #{tpu_custom_call.1} parent=1 // pred_region
      _
    $region17: #{tpu_custom_call.1} parent=1 // pred_fallthru
      _
    // Predicated region
    $region18: #{tpu_custom_call.1} parent=1 // pred_check
      _
    $region19: #{tpu_custom_call.1} parent=1 // pred_check_branch
      %57 = sbr.rel (0) target = $region21
    $region20: #{tpu_custom_call.1} parent=1 // pred_region
      %s59 = ssub.s32 512, 512
      %60 = vsyncadd [#allocation9], %s59
      %s61 = sshll.u32 [#allocation8], 4
      %s62 = int_to_ptr.vmem [resolvable:$true] %s61
      %67 = dma.hbm_to_vmem [thread:$0]  %s4, 512, %s62, [#allocation9], 128, 128, 8
    $region21: #{tpu_custom_call.1} parent=1 // pred_fallthru
      _
    // Predicated region
    $region22: #{tpu_custom_call.1} parent=1 // pred_check
      _
    $region23: #{tpu_custom_call.1} parent=1 // pred_check_branch
      %69 = sbr.rel (0) target = $region25
    $region24: #{tpu_custom_call.1} parent=1 // pred_region
      _
    $region25: #{tpu_custom_call.1} parent=1 // pred_fallthru
      _
    // Predicated region
    $region26: #{tpu_custom_call.1} parent=1 // pred_check
      _
    $region27: #{tpu_custom_call.1} parent=1 // pred_check_branch
      %71 = sbr.rel (0) target = $region29
    $region28: #{tpu_custom_call.1} parent=1 // pred_region
      %s73 = ssub.s32 512, 512
      %74 = vsyncadd [#allocation9], %s73
      %s75 = sshll.u32 [#allocation10], 4
      %s76 = int_to_ptr.vmem [resolvable:$true] %s75
      %81 = dma.hbm_to_vmem [thread:$0]  %s6, 512, %s76, [#allocation9], 128, 128, 8
    $region29: #{tpu_custom_call.1} parent=1 // pred_fallthru
      _
    // Predicated region
    $region30: #{tpu_custom_call.1} parent=1 // pred_check
      _
    $region31: #{tpu_custom_call.1} parent=1 // pred_check_branch
      %83 = sbr.rel (0) target = $region33
    $region32: #{tpu_custom_call.1} parent=1 // pred_region
      _
    $region33: #{tpu_custom_call.1} parent=1 // pred_fallthru
      _
    // Predicated region
    $region34: #{tpu_custom_call.1} parent=1 // pred_check
      _
    $region35: #{tpu_custom_call.1} parent=1 // pred_check_branch
      %85 = sbr.rel (0) target = $region37
    $region36: #{tpu_custom_call.1} parent=1 // pred_region
      %86 = dma.done [#allocation3], 256
    $region37: #{tpu_custom_call.1} parent=1 // pred_fallthru
      _
    // Predicated region
    $region38: #{tpu_custom_call.1} parent=1 // pred_check
      _
    $region39: #{tpu_custom_call.1} parent=1 // pred_check_branch
      %88 = sbr.rel (0) target = $region41
    $region40: #{tpu_custom_call.1} parent=1 // pred_region
      %89 = dma.done [#allocation6], 256
    $region41: #{tpu_custom_call.1} parent=1 // pred_fallthru
      _
    // Predicated region
    $region42: #{tpu_custom_call.1} parent=1 // pred_check
      _
    $region43: #{tpu_custom_call.1} parent=1 // pred_check_branch
      %91 = sbr.rel (0) target = $region45
    $region44: #{tpu_custom_call.1} parent=1 // pred_region
      %92 = dma.done [#allocation6], 128
    $region45: #{tpu_custom_call.1} parent=1 // pred_fallthru
      _
    // Predicated region
    $region46: #{tpu_custom_call.1} parent=1 // pred_check
      _
    $region47: #{tpu_custom_call.1} parent=1 // pred_check_branch
      %94 = sbr.rel (0) target = $region49
    $region48: #{tpu_custom_call.1} parent=1 // pred_region
      %95 = dma.done [#allocation9], 512
    $region49: #{tpu_custom_call.1} parent=1 // pred_fallthru
      _
    // Predicated region
    $region50: #{tpu_custom_call.1} parent=1 // pred_check
      _
    $region51: #{tpu_custom_call.1} parent=1 // pred_check_branch
      %97 = sbr.rel (0) target = $region53
    $region52: #{tpu_custom_call.1} parent=1 // pred_region
      %98 = dma.done [#allocation9], 512
    $region53: #{tpu_custom_call.1} parent=1 // pred_fallthru
      _
    %v99 = vld [vmem:[#allocation2] sm:$0x3]
    %v100 = vld [vmem:[#allocation2 + $0x2] sm:$0x3]
    %v101 = vld [vmem:[#allocation2 + $0x4] sm:$0x3]
    %v102 = vld [vmem:[#allocation2 + $0x6] sm:$0x3]
    %v103 = vld [vmem:[#allocation2 + $0x8] sm:$0x3]
    %v104 = vld [vmem:[#allocation2 + $0xa] sm:$0x3]
    %v105 = vld [vmem:[#allocation2 + $0xc] sm:$0x3]
    %v106 = vld [vmem:[#allocation2 + $0xe] sm:$0x3]
    %v107 = vld [vmem:[#allocation8] sm:$0xff]
    %v108 = vld [vmem:[#allocation8 + $0x8] sm:$0xff]
    %v109 = vld [vmem:[#allocation8 + $0x10] sm:$0xff]
    %v110 = vld [vmem:[#allocation8 + $0x18] sm:$0xff]
    %v111 = vld [vmem:[%s5] sm:$0x1]
    %v113 = vlaneseq
    %v114 = vshrl.u32 %v113, 7
    %v115 = vsub.s32 0, %v114
    %v116 = vrot.slane %v111, %v115
    %v126 = vcombine.low %v99, %v100
    %v127 = vcombine.low %v101, %v102
    %v129 = vunpack.c.l.s4 1983009808
    %v130 = vunpack.c.0.s8 %v129
    %v131 = vlaneseq
    %v132 = vshrl.u32 %v131, 7
    %v133 = vsub.s32 %v130, %v132
    %v134 = vrot.slane %v126, %v133
    %v136 = vunpack.c.l.s4 1983009808
    %v137 = vunpack.c.0.s8 %v136
    %v138 = vlaneseq
    %v139 = vshrl.u32 %v138, 7
    %v140 = vsub.s32 %v137, %v139
    %v141 = vrot.slane %v127, %v140
    %v142 = vcombine.low %v134, %v141
    %v143 = vcombine.low %v103, %v104
    %v144 = vcombine.low %v105, %v106
    %v146 = vunpack.c.l.s4 1983009808
    %v147 = vunpack.c.0.s8 %v146
    %v148 = vlaneseq
    %v149 = vshrl.u32 %v148, 7
    %v150 = vsub.s32 %v147, %v149
    %v151 = vrot.slane %v143, %v150
    %v153 = vunpack.c.l.s4 1983009808
    %v154 = vunpack.c.0.s8 %v153
    %v155 = vlaneseq
    %v156 = vshrl.u32 %v155, 7
    %v157 = vsub.s32 %v154, %v156
    %v158 = vrot.slane %v144, %v157
    %v159 = vcombine.low %v151, %v158
    %vm160 = vcmask 261120
    %v161 = vsel %vm160, %v142, 0
    %v163 = vsel %vm160, %v159, 0
    %165 = vmatprep.subr.mxu0 0.0
    %166 = vmatpush1.msra.mxu0 %v107
    %167 = vmatprep.subr.mxu0 0.0
    %168 = vmatpush1.msra.mxu0 %v108
    %169 = vmatprep.subr.mxu0 0.0
    %170 = vmatpush1.msra.mxu0 %v109
    %171 = vmatprep.subr.mxu0 0.0
    %172 = vmatpush1.msra.mxu0 %v110
    %173 = vmatprep.subr.mxu0 0.0
    %174 = vmatpush1.msra.mxu0 0.0
    %175 = vmatprep.subr.mxu0 0.0
    %176 = vmatpush1.msra.mxu0 0.0
    %177 = vmatprep.subr.mxu0 0.0
    %178 = vmatpush1.msra.mxu0 0.0
    %179 = vmatprep.subr.mxu0 0.0
    %180 = vmatpush1.msra.mxu0 0.0
    %181 = vmatprep.subr.mxu0 0.0
    %182 = vmatpush1.msra.mxu0 0.0
    %183 = vmatprep.subr.mxu0 0.0
    %184 = vmatpush1.msra.mxu0 0.0
    %185 = vmatprep.subr.mxu0 0.0
    %186 = vmatpush1.msra.mxu0 0.0
    %187 = vmatprep.subr.mxu0 0.0
    %188 = vmatpush1.msra.mxu0 0.0
    %189 = vmatprep.subr.mxu0 0.0
    %190 = vmatpush1.msra.mxu0 0.0
    %191 = vmatprep.subr.mxu0 0.0
    %192 = vmatpush1.msra.mxu0 0.0
    %193 = vmatprep.subr.mxu0 0.0
    %194 = vmatpush1.msra.mxu0 0.0
    %195 = vmatprep.subr.mxu0 0.0
    %196 = vmatpush1.msra.mxu0 0.0
    %197 = vmatprep.subr.mxu0 0.0
    %198 = vmatpush1.msra.mxu0 0.0
    %199 = vmatprep.subr.mxu0 0.0
    %200 = vmatpush1.msra.mxu0 0.0
    %201 = vmatprep.subr.mxu0 0.0
    %202 = vmatpush1.msra.mxu0 0.0
    %203 = vmatprep.subr.mxu0 0.0
    %204 = vmatpush1.msra.mxu0 0.0
    %205 = vmatprep.subr.mxu0 0.0
    %206 = vmatpush1.msra.mxu0 0.0
    %207 = vmatprep.subr.mxu0 0.0
    %208 = vmatpush1.msra.mxu0 0.0
    %209 = vmatprep.subr.mxu0 0.0
    %210 = vmatpush1.msra.mxu0 0.0
    %211 = vmatprep.subr.mxu0 0.0
    %212 = vmatpush1.msra.mxu0 0.0
    %213 = vmatprep.subr.mxu0 0.0
    %214 = vmatpush1.msra.mxu0 0.0
    %215 = vmatprep.subr.mxu0 0.0
    %216 = vmatpush1.msra.mxu0 0.0
    %217 = vmatprep.subr.mxu0 0.0
    %218 = vmatpush1.msra.mxu0 0.0
    %219 = vmatprep.subr.mxu0 0.0
    %220 = vmatpush1.msra.mxu0 0.0
    %221 = vmatprep.subr.mxu0 0.0
    %222 = vmatpush1.msra.mxu0 0.0
    %223 = vmatprep.subr.mxu0 0.0
    %224 = vmatpush1.msra.mxu0 0.0
    %225 = vmatprep.subr.mxu0 0.0
    %226 = vmatpush1.msra.mxu0 0.0
    %227 = vmatprep.subr.mxu0 0.0
    %228 = vmatpush1.msra.mxu0 0.0
    %229 = vmatprep.mubr.f32.mxu0 0.0
    %230 = vmatmul.mubr.f32.gmra.mrb[0].mxu0 %v161
    %v231 = vpop.f32.mrb[0].mxu0
    %v232 = vadd.f32 %v116, %v231
    %v233 = vpop.f32.mrb[0].mxu0
    %234 = vmatprep.mubr.f32.mxu0 0.0
    %235 = vmatmul.mubr.f32.gmra.mrb[0].mxu0 %v163
    %v236 = vpop.f32.mrb[0].mxu0
    %v237 = vadd.f32 %v116, %v236
    %v238 = vpop.f32.mrb[0].mxu0
    %239 = vdwg.mxu0
    %242 = vrot.lane.b32.xlu0 %v232, 120
    %v243 = vpop.permute.xlu0 %242
    %244 = vrot.lane.b32.xlu0 %v237, 120
    %v245 = vpop.permute.xlu0 %244
    %246 = vrot.lane.b32.xlu0 %v232, 112
    %v247 = vpop.permute.xlu0 %246
    %248 = vrot.lane.b32.xlu0 %v237, 112
    %v249 = vpop.permute.xlu0 %248
    %250 = vrot.lane.b32.xlu0 %v232, 104
    %v251 = vpop.permute.xlu0 %250
    %252 = vrot.lane.b32.xlu0 %v237, 104
    %v253 = vpop.permute.xlu0 %252
    %v254 = vld [vmem:[#allocation5] sm:$0xff]
    %v255 = vld [vmem:[#allocation5 + $0x8] sm:$0xff]
    %256 = vrot.lane.b32.xlu0 %v232, 96
    %v257 = vpop.permute.xlu0 %256
    %258 = vrot.lane.b32.xlu0 %v237, 96
    %v259 = vpop.permute.xlu0 %258
    %vm260 = vcmask 64512
    %v261 = vsel %vm260, %v232, 0
    %v263 = vsel %vm260, %v237, 0
    %v265 = vsel %vm260, %v257, 0
    %v267 = vsel %vm260, %v259, 0
    %269 = vmatprep.subr.mxu0 0.0
    %270 = vmatpush1.xpose.msra.mxu0 %v265
    %271 = vmatprep.subr.mxu0 0.0
    %272 = vmatpush1.xpose.msra.mxu0 %v267
    %273 = vmatprep.subr.mxu0 0.0
    %274 = vmatpush1.xpose.msra.mxu0 0.0
    %275 = vmatprep.subr.mxu0 0.0
    %276 = vmatpush1.xpose.msra.mxu0 0.0
    %277 = vmatprep.subr.mxu0 0.0
    %278 = vmatpush1.xpose.msra.mxu0 0.0
    %279 = vmatprep.subr.mxu0 0.0
    %280 = vmatpush1.xpose.msra.mxu0 0.0
    %281 = vmatprep.subr.mxu0 0.0
    %282 = vmatpush1.xpose.msra.mxu0 0.0
    %283 = vmatprep.subr.mxu0 0.0
    %284 = vmatpush1.xpose.msra.mxu0 0.0
    %285 = vmatprep.subr.mxu0 0.0
    %286 = vmatpush1.xpose.msra.mxu0 0.0
    %287 = vmatprep.subr.mxu0 0.0
    %288 = vmatpush1.xpose.msra.mxu0 0.0
    %289 = vmatprep.subr.mxu0 0.0
    %290 = vmatpush1.xpose.msra.mxu0 0.0
    %291 = vmatprep.subr.mxu0 0.0
    %292 = vmatpush1.xpose.msra.mxu0 0.0
    %293 = vmatprep.subr.mxu0 0.0
    %294 = vmatpush1.xpose.msra.mxu0 0.0
    %295 = vmatprep.subr.mxu0 0.0
    %296 = vmatpush1.xpose.msra.mxu0 0.0
    %297 = vmatprep.subr.mxu0 0.0
    %298 = vmatpush1.xpose.msra.mxu0 0.0
    %299 = vmatprep.subr.mxu0 0.0
    %300 = vmatpush1.xpose.msra.mxu0 0.0
    %301 = vmatprep.subr.mxu0 0.0
    %302 = vmatpush1.xpose.msra.mxu0 0.0
    %303 = vmatprep.subr.mxu0 0.0
    %304 = vmatpush1.xpose.msra.mxu0 0.0
    %305 = vmatprep.subr.mxu0 0.0
    %306 = vmatpush1.xpose.msra.mxu0 0.0
    %307 = vmatprep.subr.mxu0 0.0
    %308 = vmatpush1.xpose.msra.mxu0 0.0
    %309 = vmatprep.subr.mxu0 0.0
    %310 = vmatpush1.xpose.msra.mxu0 0.0
    %311 = vmatprep.subr.mxu0 0.0
    %312 = vmatpush1.xpose.msra.mxu0 0.0
    %313 = vmatprep.subr.mxu0 0.0
    %314 = vmatpush1.xpose.msra.mxu0 0.0
    %315 = vmatprep.subr.mxu0 0.0
    %316 = vmatpush1.xpose.msra.mxu0 0.0
    %317 = vmatprep.subr.mxu0 0.0
    %318 = vmatpush1.xpose.msra.mxu0 0.0
    %319 = vmatprep.subr.mxu0 0.0
    %320 = vmatpush1.xpose.msra.mxu0 0.0
    %321 = vmatprep.subr.mxu0 0.0
    %322 = vmatpush1.xpose.msra.mxu0 0.0
    %323 = vmatprep.subr.mxu0 0.0
    %324 = vmatpush1.xpose.msra.mxu0 0.0
    %325 = vmatprep.subr.mxu0 0.0
    %326 = vmatpush1.xpose.msra.mxu0 0.0
    %327 = vmatprep.subr.mxu0 0.0
    %328 = vmatpush1.xpose.msra.mxu0 0.0
    %329 = vmatprep.subr.mxu0 0.0
    %330 = vmatpush1.xpose.msra.mxu0 0.0
    %331 = vmatprep.subr.mxu0 0.0
    %332 = vmatpush1.xpose.msra.mxu0 0.0
    %333 = vmatprep.mubr.f32.mxu0 0.0
    %334 = vmatmul.mubr.f32.gmra.mrb[0].mxu0 %v261
    %v335 = vpop.f32.mrb[0].mxu0
    %v336 = vadd.f32 %v254, %v335
    %v337 = vpop.f32.mrb[0].mxu0
    %338 = vmatprep.mubr.f32.mxu0 0.0
    %339 = vmatmul.mubr.f32.gmra.mrb[0].mxu0 %v263
    %v340 = vpop.f32.mrb[0].mxu0
    %v341 = vadd.f32 %v255, %v340
    %v342 = vpop.f32.mrb[0].mxu0
    %343 = vdwg.mxu0
    %344 = vrot.lane.b32.xlu0 %v243, 96
    %v345 = vpop.permute.xlu0 %344
    %346 = vrot.lane.b32.xlu0 %v245, 96
    %v347 = vpop.permute.xlu0 %346
    %v348 = vsel %vm260, %v243, 0
    %v350 = vsel %vm260, %v245, 0
    %v352 = vsel %vm260, %v345, 0
    %v354 = vsel %vm260, %v347, 0
    %356 = vmatprep.subr.mxu0 0.0
    %357 = vmatpush1.xpose.msra.mxu0 %v352
    %358 = vmatprep.subr.mxu0 0.0
    %359 = vmatpush1.xpose.msra.mxu0 %v354
    %360 = vmatprep.subr.mxu0 0.0
    %361 = vmatpush1.xpose.msra.mxu0 0.0
    %362 = vmatprep.subr.mxu0 0.0
    %363 = vmatpush1.xpose.msra.mxu0 0.0
    %364 = vmatprep.subr.mxu0 0.0
    %365 = vmatpush1.xpose.msra.mxu0 0.0
    %366 = vmatprep.subr.mxu0 0.0
    %367 = vmatpush1.xpose.msra.mxu0 0.0
    %368 = vmatprep.subr.mxu0 0.0
    %369 = vmatpush1.xpose.msra.mxu0 0.0
    %370 = vmatprep.subr.mxu0 0.0
    %371 = vmatpush1.xpose.msra.mxu0 0.0
    %372 = vmatprep.subr.mxu0 0.0
    %373 = vmatpush1.xpose.msra.mxu0 0.0
    %374 = vmatprep.subr.mxu0 0.0
    %375 = vmatpush1.xpose.msra.mxu0 0.0
    %376 = vmatprep.subr.mxu0 0.0
    %377 = vmatpush1.xpose.msra.mxu0 0.0
    %378 = vmatprep.subr.mxu0 0.0
    %379 = vmatpush1.xpose.msra.mxu0 0.0
    %380 = vmatprep.subr.mxu0 0.0
    %381 = vmatpush1.xpose.msra.mxu0 0.0
    %382 = vmatprep.subr.mxu0 0.0
    %383 = vmatpush1.xpose.msra.mxu0 0.0
    %384 = vmatprep.subr.mxu0 0.0
    %385 = vmatpush1.xpose.msra.mxu0 0.0
    %386 = vmatprep.subr.mxu0 0.0
    %387 = vmatpush1.xpose.msra.mxu0 0.0
    %388 = vmatprep.subr.mxu0 0.0
    %389 = vmatpush1.xpose.msra.mxu0 0.0
    %390 = vmatprep.subr.mxu0 0.0
    %391 = vmatpush1.xpose.msra.mxu0 0.0
    %392 = vmatprep.subr.mxu0 0.0
    %393 = vmatpush1.xpose.msra.mxu0 0.0
    %394 = vmatprep.subr.mxu0 0.0
    %395 = vmatpush1.xpose.msra.mxu0 0.0
    %396 = vmatprep.subr.mxu0 0.0
    %397 = vmatpush1.xpose.msra.mxu0 0.0
    %398 = vmatprep.subr.mxu0 0.0
    %399 = vmatpush1.xpose.msra.mxu0 0.0
    %400 = vmatprep.subr.mxu0 0.0
    %401 = vmatpush1.xpose.msra.mxu0 0.0
    %402 = vmatprep.subr.mxu0 0.0
    %403 = vmatpush1.xpose.msra.mxu0 0.0
    %404 = vmatprep.subr.mxu0 0.0
    %405 = vmatpush1.xpose.msra.mxu0 0.0
    %406 = vmatprep.subr.mxu0 0.0
    %407 = vmatpush1.xpose.msra.mxu0 0.0
    %408 = vmatprep.subr.mxu0 0.0
    %409 = vmatpush1.xpose.msra.mxu0 0.0
    %410 = vmatprep.subr.mxu0 0.0
    %411 = vmatpush1.xpose.msra.mxu0 0.0
    %412 = vmatprep.subr.mxu0 0.0
    %413 = vmatpush1.xpose.msra.mxu0 0.0
    %414 = vmatprep.subr.mxu0 0.0
    %415 = vmatpush1.xpose.msra.mxu0 0.0
    %416 = vmatprep.subr.mxu0 0.0
    %417 = vmatpush1.xpose.msra.mxu0 0.0
    %418 = vmatprep.subr.mxu0 0.0
    %419 = vmatpush1.xpose.msra.mxu0 0.0
    %420 = vmatprep.mubr.f32.mxu0 0.0
    %421 = vmatmul.mubr.f32.gmra.mrb[0].mxu0 %v348
    %v422 = vpop.f32.mrb[0].mxu0
    %v423 = vadd.f32 %v254, %v422
    %v424 = vpop.f32.mrb[0].mxu0
    %425 = vmatprep.mubr.f32.mxu0 0.0
    %426 = vmatmul.mubr.f32.gmra.mrb[0].mxu0 %v350
    %v427 = vpop.f32.mrb[0].mxu0
    %v428 = vadd.f32 %v255, %v427
    %v429 = vpop.f32.mrb[0].mxu0
    %430 = vdwg.mxu0
    %431 = vrot.lane.b32.xlu0 %v247, 96
    %v432 = vpop.permute.xlu0 %431
    %433 = vrot.lane.b32.xlu0 %v249, 96
    %v434 = vpop.permute.xlu0 %433
    %v435 = vsel %vm260, %v247, 0
    %v437 = vsel %vm260, %v249, 0
    %v439 = vsel %vm260, %v432, 0
    %v441 = vsel %vm260, %v434, 0
    %443 = vmatprep.subr.mxu0 0.0
    %444 = vmatpush1.xpose.msra.mxu0 %v439
    %445 = vmatprep.subr.mxu0 0.0
    %446 = vmatpush1.xpose.msra.mxu0 %v441
    %447 = vmatprep.subr.mxu0 0.0
    %448 = vmatpush1.xpose.msra.mxu0 0.0
    %449 = vmatprep.subr.mxu0 0.0
    %450 = vmatpush1.xpose.msra.mxu0 0.0
    %451 = vmatprep.subr.mxu0 0.0
    %452 = vmatpush1.xpose.msra.mxu0 0.0
    %453 = vmatprep.subr.mxu0 0.0
    %454 = vmatpush1.xpose.msra.mxu0 0.0
    %455 = vmatprep.subr.mxu0 0.0
    %456 = vmatpush1.xpose.msra.mxu0 0.0
    %457 = vmatprep.subr.mxu0 0.0
    %458 = vmatpush1.xpose.msra.mxu0 0.0
    %459 = vmatprep.subr.mxu0 0.0
    %460 = vmatpush1.xpose.msra.mxu0 0.0
    %461 = vmatprep.subr.mxu0 0.0
    %462 = vmatpush1.xpose.msra.mxu0 0.0
    %463 = vmatprep.subr.mxu0 0.0
    %464 = vmatpush1.xpose.msra.mxu0 0.0
    %465 = vmatprep.subr.mxu0 0.0
    %466 = vmatpush1.xpose.msra.mxu0 0.0
    %467 = vmatprep.subr.mxu0 0.0
    %468 = vmatpush1.xpose.msra.mxu0 0.0
    %469 = vmatprep.subr.mxu0 0.0
    %470 = vmatpush1.xpose.msra.mxu0 0.0
    %471 = vmatprep.subr.mxu0 0.0
    %472 = vmatpush1.xpose.msra.mxu0 0.0
    %473 = vmatprep.subr.mxu0 0.0
    %474 = vmatpush1.xpose.msra.mxu0 0.0
    %475 = vmatprep.subr.mxu0 0.0
    %476 = vmatpush1.xpose.msra.mxu0 0.0
    %477 = vmatprep.subr.mxu0 0.0
    %478 = vmatpush1.xpose.msra.mxu0 0.0
    %479 = vmatprep.subr.mxu0 0.0
    %480 = vmatpush1.xpose.msra.mxu0 0.0
    %481 = vmatprep.subr.mxu0 0.0
    %482 = vmatpush1.xpose.msra.mxu0 0.0
    %483 = vmatprep.subr.mxu0 0.0
    %484 = vmatpush1.xpose.msra.mxu0 0.0
    %485 = vmatprep.subr.mxu0 0.0
    %486 = vmatpush1.xpose.msra.mxu0 0.0
    %487 = vmatprep.subr.mxu0 0.0
    %488 = vmatpush1.xpose.msra.mxu0 0.0
    %489 = vmatprep.subr.mxu0 0.0
    %490 = vmatpush1.xpose.msra.mxu0 0.0
    %491 = vmatprep.subr.mxu0 0.0
    %492 = vmatpush1.xpose.msra.mxu0 0.0
    %493 = vmatprep.subr.mxu0 0.0
    %494 = vmatpush1.xpose.msra.mxu0 0.0
    %495 = vmatprep.subr.mxu0 0.0
    %496 = vmatpush1.xpose.msra.mxu0 0.0
    %497 = vmatprep.subr.mxu0 0.0
    %498 = vmatpush1.xpose.msra.mxu0 0.0
    %499 = vmatprep.subr.mxu0 0.0
    %500 = vmatpush1.xpose.msra.mxu0 0.0
    %501 = vmatprep.subr.mxu0 0.0
    %502 = vmatpush1.xpose.msra.mxu0 0.0
    %503 = vmatprep.subr.mxu0 0.0
    %504 = vmatpush1.xpose.msra.mxu0 0.0
    %505 = vmatprep.subr.mxu0 0.0
    %506 = vmatpush1.xpose.msra.mxu0 0.0
    %507 = vmatprep.mubr.f32.mxu0 0.0
    %508 = vmatmul.mubr.f32.gmra.mrb[0].mxu0 %v435
    %v509 = vpop.f32.mrb[0].mxu0
    %v510 = vadd.f32 %v254, %v509
    %v511 = vpop.f32.mrb[0].mxu0
    %512 = vmatprep.mubr.f32.mxu0 0.0
    %513 = vmatmul.mubr.f32.gmra.mrb[0].mxu0 %v437
    %v514 = vpop.f32.mrb[0].mxu0
    %v515 = vadd.f32 %v255, %v514
    %v516 = vpop.f32.mrb[0].mxu0
    %517 = vdwg.mxu0
    %518 = vrot.lane.b32.xlu0 %v251, 96
    %v519 = vpop.permute.xlu0 %518
    %520 = vrot.lane.b32.xlu0 %v253, 96
    %v521 = vpop.permute.xlu0 %520
    %v522 = vsel %vm260, %v251, 0
    %v524 = vsel %vm260, %v253, 0
    %v526 = vsel %vm260, %v519, 0
    %v528 = vsel %vm260, %v521, 0
    %530 = vmatprep.subr.mxu0 0.0
    %531 = vmatpush1.xpose.msra.mxu0 %v526
    %532 = vmatprep.subr.mxu0 0.0
    %533 = vmatpush1.xpose.msra.mxu0 %v528
    %534 = vmatprep.subr.mxu0 0.0
    %535 = vmatpush1.xpose.msra.mxu0 0.0
    %536 = vmatprep.subr.mxu0 0.0
    %537 = vmatpush1.xpose.msra.mxu0 0.0
    %538 = vmatprep.subr.mxu0 0.0
    %539 = vmatpush1.xpose.msra.mxu0 0.0
    %540 = vmatprep.subr.mxu0 0.0
    %541 = vmatpush1.xpose.msra.mxu0 0.0
    %542 = vmatprep.subr.mxu0 0.0
    %543 = vmatpush1.xpose.msra.mxu0 0.0
    %544 = vmatprep.subr.mxu0 0.0
    %545 = vmatpush1.xpose.msra.mxu0 0.0
    %546 = vmatprep.subr.mxu0 0.0
    %547 = vmatpush1.xpose.msra.mxu0 0.0
    %548 = vmatprep.subr.mxu0 0.0
    %549 = vmatpush1.xpose.msra.mxu0 0.0
    %550 = vmatprep.subr.mxu0 0.0
    %551 = vmatpush1.xpose.msra.mxu0 0.0
    %552 = vmatprep.subr.mxu0 0.0
    %553 = vmatpush1.xpose.msra.mxu0 0.0
    %554 = vmatprep.subr.mxu0 0.0
    %555 = vmatpush1.xpose.msra.mxu0 0.0
    %556 = vmatprep.subr.mxu0 0.0
    %557 = vmatpush1.xpose.msra.mxu0 0.0
    %558 = vmatprep.subr.mxu0 0.0
    %559 = vmatpush1.xpose.msra.mxu0 0.0
    %560 = vmatprep.subr.mxu0 0.0
    %561 = vmatpush1.xpose.msra.mxu0 0.0
    %562 = vmatprep.subr.mxu0 0.0
    %563 = vmatpush1.xpose.msra.mxu0 0.0
    %564 = vmatprep.subr.mxu0 0.0
    %565 = vmatpush1.xpose.msra.mxu0 0.0
    %566 = vmatprep.subr.mxu0 0.0
    %567 = vmatpush1.xpose.msra.mxu0 0.0
    %568 = vmatprep.subr.mxu0 0.0
    %569 = vmatpush1.xpose.msra.mxu0 0.0
    %570 = vmatprep.subr.mxu0 0.0
    %571 = vmatpush1.xpose.msra.mxu0 0.0
    %572 = vmatprep.subr.mxu0 0.0
    %573 = vmatpush1.xpose.msra.mxu0 0.0
    %574 = vmatprep.subr.mxu0 0.0
    %575 = vmatpush1.xpose.msra.mxu0 0.0
    %576 = vmatprep.subr.mxu0 0.0
    %577 = vmatpush1.xpose.msra.mxu0 0.0
    %578 = vmatprep.subr.mxu0 0.0
    %579 = vmatpush1.xpose.msra.mxu0 0.0
    %580 = vmatprep.subr.mxu0 0.0
    %581 = vmatpush1.xpose.msra.mxu0 0.0
    %582 = vmatprep.subr.mxu0 0.0
    %583 = vmatpush1.xpose.msra.mxu0 0.0
    %584 = vmatprep.subr.mxu0 0.0
    %585 = vmatpush1.xpose.msra.mxu0 0.0
    %586 = vmatprep.subr.mxu0 0.0
    %587 = vmatpush1.xpose.msra.mxu0 0.0
    %588 = vmatprep.subr.mxu0 0.0
    %589 = vmatpush1.xpose.msra.mxu0 0.0
    %590 = vmatprep.subr.mxu0 0.0
    %591 = vmatpush1.xpose.msra.mxu0 0.0
    %592 = vmatprep.subr.mxu0 0.0
    %593 = vmatpush1.xpose.msra.mxu0 0.0
    %594 = vmatprep.mubr.f32.mxu0 0.0
    %595 = vmatmul.mubr.f32.gmra.mrb[0].mxu0 %v522
    %v596 = vpop.f32.mrb[0].mxu0
    %v597 = vadd.f32 %v254, %v596
    %v598 = vpop.f32.mrb[0].mxu0
    %599 = vmatprep.mubr.f32.mxu0 0.0
    %600 = vmatmul.mubr.f32.gmra.mrb[0].mxu0 %v524
    %v601 = vpop.f32.mrb[0].mxu0
    %v602 = vadd.f32 %v255, %v601
    %v603 = vpop.f32.mrb[0].mxu0
    %604 = vdwg.mxu0
    %vm605 = vcmask 130048
    %v606 = vsel %vm605, %v336, -inf
    %607 = vmax.xlane.f32.xlu0 %v606
    %v608 = vpop.xlane.xlu0 %607
    %v609 = vsel %vm605, %v341, -inf
    %610 = vmax.xlane.f32.xlu0 %v609
    %v611 = vpop.xlane.xlu0 %610
    %v612 = vsel %vm605, %v423, -inf
    %613 = vmax.xlane.f32.xlu0 %v612
    %v614 = vpop.xlane.xlu0 %613
    %v615 = vsel %vm605, %v428, -inf
    %616 = vmax.xlane.f32.xlu0 %v615
    %v617 = vpop.xlane.xlu0 %616
    %v618 = vsel %vm605, %v510, -inf
    %619 = vmax.xlane.f32.xlu0 %v618
    %v620 = vpop.xlane.xlu0 %619
    %v621 = vsel %vm605, %v515, -inf
    %622 = vmax.xlane.f32.xlu0 %v621
    %v623 = vpop.xlane.xlu0 %622
    %v624 = vsel %vm605, %v597, -inf
    %625 = vmax.xlane.f32.xlu0 %v624
    %v626 = vpop.xlane.xlu0 %625
    %v627 = vsel %vm605, %v602, -inf
    %628 = vmax.xlane.f32.xlu0 %v627
    %v629 = vpop.xlane.xlu0 %628
    %v630 = vsub.f32 %v336, %v608
    %v631 = vsub.f32 %v341, %v611
    %v632 = vsub.f32 %v423, %v614
    %v633 = vsub.f32 %v428, %v617
    %v634 = vsub.f32 %v510, %v620
    %v635 = vsub.f32 %v515, %v623
    %v636 = vsub.f32 %v597, %v626
    %v637 = vsub.f32 %v602, %v629
    %v638 = vmul.f32 %v630, 1.442695
    %v639 = vpow.pop %v638
    %v640 = vmul.f32 %v631, 1.442695
    %v641 = vpow.pop %v640
    %v642 = vmul.f32 %v632, 1.442695
    %v643 = vpow.pop %v642
    %v644 = vmul.f32 %v633, 1.442695
    %v645 = vpow.pop %v644
    %v646 = vmul.f32 %v634, 1.442695
    %v647 = vpow.pop %v646
    %v648 = vmul.f32 %v635, 1.442695
    %v649 = vpow.pop %v648
    %v650 = vmul.f32 %v636, 1.442695
    %v651 = vpow.pop %v650
    %v652 = vmul.f32 %v637, 1.442695
    %v653 = vpow.pop %v652
    %v654 = vsel %vm605, %v639, 0.0
    %655 = vadd.xlane.f32.xlu0 %v654
    %v656 = vpop.xlane.xlu0 %655
    %v657 = vsel %vm605, %v641, 0.0
    %658 = vadd.xlane.f32.xlu0 %v657
    %v659 = vpop.xlane.xlu0 %658
    %v660 = vsel %vm605, %v643, 0.0
    %661 = vadd.xlane.f32.xlu0 %v660
    %v662 = vpop.xlane.xlu0 %661
    %v663 = vsel %vm605, %v645, 0.0
    %664 = vadd.xlane.f32.xlu0 %v663
    %v665 = vpop.xlane.xlu0 %664
    %v666 = vsel %vm605, %v647, 0.0
    %667 = vadd.xlane.f32.xlu0 %v666
    %v668 = vpop.xlane.xlu0 %667
    %v669 = vsel %vm605, %v649, 0.0
    %670 = vadd.xlane.f32.xlu0 %v669
    %v671 = vpop.xlane.xlu0 %670
    %v672 = vsel %vm605, %v651, 0.0
    %673 = vadd.xlane.f32.xlu0 %v672
    %v674 = vpop.xlane.xlu0 %673
    %v675 = vsel %vm605, %v653, 0.0
    %676 = vadd.xlane.f32.xlu0 %v675
    %v677 = vpop.xlane.xlu0 %676
    %v678 = vrcp.pop %v656
    %v679 = vrcp.pop %v659
    %v680 = vrcp.pop %v662
    %v681 = vrcp.pop %v665
    %v682 = vrcp.pop %v668
    %v683 = vrcp.pop %v671
    %v684 = vrcp.pop %v674
    %v685 = vrcp.pop %v677
    %v686 = vmul.f32 %v639, %v678
    %v687 = vmul.f32 %v641, %v679
    %v688 = vmul.f32 %v643, %v680
    %v689 = vmul.f32 %v645, %v681
    %v690 = vmul.f32 %v647, %v682
    %v691 = vmul.f32 %v649, %v683
    %v692 = vmul.f32 %v651, %v684
    %v693 = vmul.f32 %v653, %v685
    %694 = vrot.lane.b32.xlu0 %v232, 64
    %v695 = vpop.permute.xlu0 %694
    %696 = vrot.lane.b32.xlu0 %v237, 64
    %v697 = vpop.permute.xlu0 %696
    %v701 = vsel %vm605, %v686, 0
    %v704 = vsel %vm605, %v687, 0
    %706 = vmatprep.subr.mxu0 0.0
    %707 = vmatpush1.msra.mxu0 %v695
    %708 = vmatprep.subr.mxu0 0.0
    %709 = vmatpush1.msra.mxu0 %v697
    %710 = vmatprep.subr.mxu0 0.0
    %711 = vmatpush1.msra.mxu0 0.0
    %712 = vmatprep.subr.mxu0 0.0
    %713 = vmatpush1.msra.mxu0 0.0
    %714 = vmatprep.subr.mxu0 0.0
    %715 = vmatpush1.msra.mxu0 0.0
    %716 = vmatprep.subr.mxu0 0.0
    %717 = vmatpush1.msra.mxu0 0.0
    %718 = vmatprep.subr.mxu0 0.0
    %719 = vmatpush1.msra.mxu0 0.0
    %720 = vmatprep.subr.mxu0 0.0
    %721 = vmatpush1.msra.mxu0 0.0
    %722 = vmatprep.subr.mxu0 0.0
    %723 = vmatpush1.msra.mxu0 0.0
    %724 = vmatprep.subr.mxu0 0.0
    %725 = vmatpush1.msra.mxu0 0.0
    %726 = vmatprep.subr.mxu0 0.0
    %727 = vmatpush1.msra.mxu0 0.0
    %728 = vmatprep.subr.mxu0 0.0
    %729 = vmatpush1.msra.mxu0 0.0
    %730 = vmatprep.subr.mxu0 0.0
    %731 = vmatpush1.msra.mxu0 0.0
    %732 = vmatprep.subr.mxu0 0.0
    %733 = vmatpush1.msra.mxu0 0.0
    %734 = vmatprep.subr.mxu0 0.0
    %735 = vmatpush1.msra.mxu0 0.0
    %736 = vmatprep.subr.mxu0 0.0
    %737 = vmatpush1.msra.mxu0 0.0
    %738 = vmatprep.subr.mxu0 0.0
    %739 = vmatpush1.msra.mxu0 0.0
    %740 = vmatprep.subr.mxu0 0.0
    %741 = vmatpush1.msra.mxu0 0.0
    %742 = vmatprep.subr.mxu0 0.0
    %743 = vmatpush1.msra.mxu0 0.0
    %744 = vmatprep.subr.mxu0 0.0
    %745 = vmatpush1.msra.mxu0 0.0
    %746 = vmatprep.subr.mxu0 0.0
    %747 = vmatpush1.msra.mxu0 0.0
    %748 = vmatprep.subr.mxu0 0.0
    %749 = vmatpush1.msra.mxu0 0.0
    %750 = vmatprep.subr.mxu0 0.0
    %751 = vmatpush1.msra.mxu0 0.0
    %752 = vmatprep.subr.mxu0 0.0
    %753 = vmatpush1.msra.mxu0 0.0
    %754 = vmatprep.subr.mxu0 0.0
    %755 = vmatpush1.msra.mxu0 0.0
    %756 = vmatprep.subr.mxu0 0.0
    %757 = vmatpush1.msra.mxu0 0.0
    %758 = vmatprep.subr.mxu0 0.0
    %759 = vmatpush1.msra.mxu0 0.0
    %760 = vmatprep.subr.mxu0 0.0
    %761 = vmatpush1.msra.mxu0 0.0
    %762 = vmatprep.subr.mxu0 0.0
    %763 = vmatpush1.msra.mxu0 0.0
    %764 = vmatprep.subr.mxu0 0.0
    %765 = vmatpush1.msra.mxu0 0.0
    %766 = vmatprep.subr.mxu0 0.0
    %767 = vmatpush1.msra.mxu0 0.0
    %768 = vmatprep.subr.mxu0 0.0
    %769 = vmatpush1.msra.mxu0 0.0
    %770 = vmatprep.mubr.f32.mxu0 0.0
    %771 = vmatmul.mubr.f32.gmra.mrb[0].mxu0 %v701
    %v772 = vpop.f32.mrb[0].mxu0
    %v773 = vadd.f32 0.0, %v772
    %v774 = vpop.f32.mrb[0].mxu0
    %775 = vmatprep.mubr.f32.mxu0 0.0
    %776 = vmatmul.mubr.f32.gmra.mrb[0].mxu0 %v704
    %v777 = vpop.f32.mrb[0].mxu0
    %v778 = vadd.f32 0.0, %v777
    %v779 = vpop.f32.mrb[0].mxu0
    %780 = vdwg.mxu0
    %781 = vrot.lane.b32.xlu0 %v243, 64
    %v782 = vpop.permute.xlu0 %781
    %783 = vrot.lane.b32.xlu0 %v245, 64
    %v784 = vpop.permute.xlu0 %783
    %v788 = vsel %vm605, %v688, 0
    %v791 = vsel %vm605, %v689, 0
    %793 = vmatprep.subr.mxu0 0.0
    %794 = vmatpush1.msra.mxu0 %v782
    %795 = vmatprep.subr.mxu0 0.0
    %796 = vmatpush1.msra.mxu0 %v784
    %797 = vmatprep.subr.mxu0 0.0
    %798 = vmatpush1.msra.mxu0 0.0
    %799 = vmatprep.subr.mxu0 0.0
    %800 = vmatpush1.msra.mxu0 0.0
    %801 = vmatprep.subr.mxu0 0.0
    %802 = vmatpush1.msra.mxu0 0.0
    %803 = vmatprep.subr.mxu0 0.0
    %804 = vmatpush1.msra.mxu0 0.0
    %805 = vmatprep.subr.mxu0 0.0
    %806 = vmatpush1.msra.mxu0 0.0
    %807 = vmatprep.subr.mxu0 0.0
    %808 = vmatpush1.msra.mxu0 0.0
    %809 = vmatprep.subr.mxu0 0.0
    %810 = vmatpush1.msra.mxu0 0.0
    %811 = vmatprep.subr.mxu0 0.0
    %812 = vmatpush1.msra.mxu0 0.0
    %813 = vmatprep.subr.mxu0 0.0
    %814 = vmatpush1.msra.mxu0 0.0
    %815 = vmatprep.subr.mxu0 0.0
    %816 = vmatpush1.msra.mxu0 0.0
    %817 = vmatprep.subr.mxu0 0.0
    %818 = vmatpush1.msra.mxu0 0.0
    %819 = vmatprep.subr.mxu0 0.0
    %820 = vmatpush1.msra.mxu0 0.0
    %821 = vmatprep.subr.mxu0 0.0
    %822 = vmatpush1.msra.mxu0 0.0
    %823 = vmatprep.subr.mxu0 0.0
    %824 = vmatpush1.msra.mxu0 0.0
    %825 = vmatprep.subr.mxu0 0.0
    %826 = vmatpush1.msra.mxu0 0.0
    %827 = vmatprep.subr.mxu0 0.0
    %828 = vmatpush1.msra.mxu0 0.0
    %829 = vmatprep.subr.mxu0 0.0
    %830 = vmatpush1.msra.mxu0 0.0
    %831 = vmatprep.subr.mxu0 0.0
    %832 = vmatpush1.msra.mxu0 0.0
    %833 = vmatprep.subr.mxu0 0.0
    %834 = vmatpush1.msra.mxu0 0.0
    %835 = vmatprep.subr.mxu0 0.0
    %836 = vmatpush1.msra.mxu0 0.0
    %837 = vmatprep.subr.mxu0 0.0
    %838 = vmatpush1.msra.mxu0 0.0
    %839 = vmatprep.subr.mxu0 0.0
    %840 = vmatpush1.msra.mxu0 0.0
    %841 = vmatprep.subr.mxu0 0.0
    %842 = vmatpush1.msra.mxu0 0.0
    %843 = vmatprep.subr.mxu0 0.0
    %844 = vmatpush1.msra.mxu0 0.0
    %845 = vmatprep.subr.mxu0 0.0
    %846 = vmatpush1.msra.mxu0 0.0
    %847 = vmatprep.subr.mxu0 0.0
    %848 = vmatpush1.msra.mxu0 0.0
    %849 = vmatprep.subr.mxu0 0.0
    %850 = vmatpush1.msra.mxu0 0.0
    %851 = vmatprep.subr.mxu0 0.0
    %852 = vmatpush1.msra.mxu0 0.0
    %853 = vmatprep.subr.mxu0 0.0
    %854 = vmatpush1.msra.mxu0 0.0
    %855 = vmatprep.subr.mxu0 0.0
    %856 = vmatpush1.msra.mxu0 0.0
    %857 = vmatprep.mubr.f32.mxu0 0.0
    %858 = vmatmul.mubr.f32.gmra.mrb[0].mxu0 %v788
    %v859 = vpop.f32.mrb[0].mxu0
    %v860 = vadd.f32 0.0, %v859
    %v861 = vpop.f32.mrb[0].mxu0
    %862 = vmatprep.mubr.f32.mxu0 0.0
    %863 = vmatmul.mubr.f32.gmra.mrb[0].mxu0 %v791
    %v864 = vpop.f32.mrb[0].mxu0
    %v865 = vadd.f32 0.0, %v864
    %v866 = vpop.f32.mrb[0].mxu0
    %867 = vdwg.mxu0
    %868 = vrot.lane.b32.xlu0 %v247, 64
    %v869 = vpop.permute.xlu0 %868
    %870 = vrot.lane.b32.xlu0 %v249, 64
    %v871 = vpop.permute.xlu0 %870
    %v875 = vsel %vm605, %v690, 0
    %v878 = vsel %vm605, %v691, 0
    %880 = vmatprep.subr.mxu0 0.0
    %881 = vmatpush1.msra.mxu0 %v869
    %882 = vmatprep.subr.mxu0 0.0
    %883 = vmatpush1.msra.mxu0 %v871
    %884 = vmatprep.subr.mxu0 0.0
    %885 = vmatpush1.msra.mxu0 0.0
    %886 = vmatprep.subr.mxu0 0.0
    %887 = vmatpush1.msra.mxu0 0.0
    %888 = vmatprep.subr.mxu0 0.0
    %889 = vmatpush1.msra.mxu0 0.0
    %890 = vmatprep.subr.mxu0 0.0
    %891 = vmatpush1.msra.mxu0 0.0
    %892 = vmatprep.subr.mxu0 0.0
    %893 = vmatpush1.msra.mxu0 0.0
    %894 = vmatprep.subr.mxu0 0.0
    %895 = vmatpush1.msra.mxu0 0.0
    %896 = vmatprep.subr.mxu0 0.0
    %897 = vmatpush1.msra.mxu0 0.0
    %898 = vmatprep.subr.mxu0 0.0
    %899 = vmatpush1.msra.mxu0 0.0
    %900 = vmatprep.subr.mxu0 0.0
    %901 = vmatpush1.msra.mxu0 0.0
    %902 = vmatprep.subr.mxu0 0.0
    %903 = vmatpush1.msra.mxu0 0.0
    %904 = vmatprep.subr.mxu0 0.0
    %905 = vmatpush1.msra.mxu0 0.0
    %906 = vmatprep.subr.mxu0 0.0
    %907 = vmatpush1.msra.mxu0 0.0
    %908 = vmatprep.subr.mxu0 0.0
    %909 = vmatpush1.msra.mxu0 0.0
    %910 = vmatprep.subr.mxu0 0.0
    %911 = vmatpush1.msra.mxu0 0.0
    %912 = vmatprep.subr.mxu0 0.0
    %913 = vmatpush1.msra.mxu0 0.0
    %914 = vmatprep.subr.mxu0 0.0
    %915 = vmatpush1.msra.mxu0 0.0
    %916 = vmatprep.subr.mxu0 0.0
    %917 = vmatpush1.msra.mxu0 0.0
    %918 = vmatprep.subr.mxu0 0.0
    %919 = vmatpush1.msra.mxu0 0.0
    %920 = vmatprep.subr.mxu0 0.0
    %921 = vmatpush1.msra.mxu0 0.0
    %922 = vmatprep.subr.mxu0 0.0
    %923 = vmatpush1.msra.mxu0 0.0
    %924 = vmatprep.subr.mxu0 0.0
    %925 = vmatpush1.msra.mxu0 0.0
    %926 = vmatprep.subr.mxu0 0.0
    %927 = vmatpush1.msra.mxu0 0.0
    %928 = vmatprep.subr.mxu0 0.0
    %929 = vmatpush1.msra.mxu0 0.0
    %930 = vmatprep.subr.mxu0 0.0
    %931 = vmatpush1.msra.mxu0 0.0
    %932 = vmatprep.subr.mxu0 0.0
    %933 = vmatpush1.msra.mxu0 0.0
    %934 = vmatprep.subr.mxu0 0.0
    %935 = vmatpush1.msra.mxu0 0.0
    %936 = vmatprep.subr.mxu0 0.0
    %937 = vmatpush1.msra.mxu0 0.0
    %938 = vmatprep.subr.mxu0 0.0
    %939 = vmatpush1.msra.mxu0 0.0
    %940 = vmatprep.subr.mxu0 0.0
    %941 = vmatpush1.msra.mxu0 0.0
    %942 = vmatprep.subr.mxu0 0.0
    %943 = vmatpush1.msra.mxu0 0.0
    %944 = vmatprep.mubr.f32.mxu0 0.0
    %945 = vmatmul.mubr.f32.gmra.mrb[0].mxu0 %v875
    %v946 = vpop.f32.mrb[0].mxu0
    %v947 = vadd.f32 0.0, %v946
    %v948 = vpop.f32.mrb[0].mxu0
    %949 = vmatprep.mubr.f32.mxu0 0.0
    %950 = vmatmul.mubr.f32.gmra.mrb[0].mxu0 %v878
    %v951 = vpop.f32.mrb[0].mxu0
    %v952 = vadd.f32 0.0, %v951
    %v953 = vpop.f32.mrb[0].mxu0
    %954 = vdwg.mxu0
    %955 = vrot.lane.b32.xlu0 %v251, 64
    %v956 = vpop.permute.xlu0 %955
    %957 = vrot.lane.b32.xlu0 %v253, 64
    %v958 = vpop.permute.xlu0 %957
    %v962 = vsel %vm605, %v692, 0
    %v965 = vsel %vm605, %v693, 0
    %967 = vmatprep.subr.mxu0 0.0
    %968 = vmatpush1.msra.mxu0 %v956
    %969 = vmatprep.subr.mxu0 0.0
    %970 = vmatpush1.msra.mxu0 %v958
    %971 = vmatprep.subr.mxu0 0.0
    %972 = vmatpush1.msra.mxu0 0.0
    %973 = vmatprep.subr.mxu0 0.0
    %974 = vmatpush1.msra.mxu0 0.0
    %975 = vmatprep.subr.mxu0 0.0
    %976 = vmatpush1.msra.mxu0 0.0
    %977 = vmatprep.subr.mxu0 0.0
    %978 = vmatpush1.msra.mxu0 0.0
    %979 = vmatprep.subr.mxu0 0.0
    %980 = vmatpush1.msra.mxu0 0.0
    %981 = vmatprep.subr.mxu0 0.0
    %982 = vmatpush1.msra.mxu0 0.0
    %983 = vmatprep.subr.mxu0 0.0
    %984 = vmatpush1.msra.mxu0 0.0
    %985 = vmatprep.subr.mxu0 0.0
    %986 = vmatpush1.msra.mxu0 0.0
    %987 = vmatprep.subr.mxu0 0.0
    %988 = vmatpush1.msra.mxu0 0.0
    %989 = vmatprep.subr.mxu0 0.0
    %990 = vmatpush1.msra.mxu0 0.0
    %991 = vmatprep.subr.mxu0 0.0
    %992 = vmatpush1.msra.mxu0 0.0
    %993 = vmatprep.subr.mxu0 0.0
    %994 = vmatpush1.msra.mxu0 0.0
    %995 = vmatprep.subr.mxu0 0.0
    %996 = vmatpush1.msra.mxu0 0.0
    %997 = vmatprep.subr.mxu0 0.0
    %998 = vmatpush1.msra.mxu0 0.0
    %999 = vmatprep.subr.mxu0 0.0
    %1000 = vmatpush1.msra.mxu0 0.0
    %1001 = vmatprep.subr.mxu0 0.0
    %1002 = vmatpush1.msra.mxu0 0.0
    %1003 = vmatprep.subr.mxu0 0.0
    %1004 = vmatpush1.msra.mxu0 0.0
    %1005 = vmatprep.subr.mxu0 0.0
    %1006 = vmatpush1.msra.mxu0 0.0
    %1007 = vmatprep.subr.mxu0 0.0
    %1008 = vmatpush1.msra.mxu0 0.0
    %1009 = vmatprep.subr.mxu0 0.0
    %1010 = vmatpush1.msra.mxu0 0.0
    %1011 = vmatprep.subr.mxu0 0.0
    %1012 = vmatpush1.msra.mxu0 0.0
    %1013 = vmatprep.subr.mxu0 0.0
    %1014 = vmatpush1.msra.mxu0 0.0
    %1015 = vmatprep.subr.mxu0 0.0
    %1016 = vmatpush1.msra.mxu0 0.0
    %1017 = vmatprep.subr.mxu0 0.0
    %1018 = vmatpush1.msra.mxu0 0.0
    %1019 = vmatprep.subr.mxu0 0.0
    %1020 = vmatpush1.msra.mxu0 0.0
    %1021 = vmatprep.subr.mxu0 0.0
    %1022 = vmatpush1.msra.mxu0 0.0
    %1023 = vmatprep.subr.mxu0 0.0
    %1024 = vmatpush1.msra.mxu0 0.0
    %1025 = vmatprep.subr.mxu0 0.0
    %1026 = vmatpush1.msra.mxu0 0.0
    %1027 = vmatprep.subr.mxu0 0.0
    %1028 = vmatpush1.msra.mxu0 0.0
    %1029 = vmatprep.subr.mxu0 0.0
    %1030 = vmatpush1.msra.mxu0 0.0
    %1031 = vmatprep.mubr.f32.mxu0 0.0
    %1032 = vmatmul.mubr.f32.gmra.mrb[0].mxu0 %v962
    %v1033 = vpop.f32.mrb[0].mxu0
    %v1034 = vadd.f32 0.0, %v1033
    %v1035 = vpop.f32.mrb[0].mxu0
    %1036 = vmatprep.mubr.f32.mxu0 0.0
    %1037 = vmatmul.mubr.f32.gmra.mrb[0].mxu0 %v965
    %v1038 = vpop.f32.mrb[0].mxu0
    %v1039 = vadd.f32 0.0, %v1038
    %v1040 = vpop.f32.mrb[0].mxu0
    %1041 = vdwg.mxu0
    %1044 = vrot.lane.b32.xlu0 %v860, 8
    %v1045 = vpop.permute.xlu0 %1044
    %1046 = vrot.lane.b32.xlu0 %v865, 8
    %v1047 = vpop.permute.xlu0 %1046
    %1052 = vrot.lane.b32.xlu0 %v947, 16
    %v1053 = vpop.permute.xlu0 %1052
    %1054 = vrot.lane.b32.xlu0 %v952, 16
    %v1055 = vpop.permute.xlu0 %1054
    %1060 = vrot.lane.b32.xlu0 %v1034, 24
    %v1061 = vpop.permute.xlu0 %1060
    %1062 = vrot.lane.b32.xlu0 %v1039, 24
    %v1063 = vpop.permute.xlu0 %1062
    %v1066 = vsel %vm260, %v773, %v1045
    %v1067 = vsel %vm260, %v778, %v1047
    %v1068 = vsel %vm605, %v1066, %v1053
    %v1069 = vsel %vm605, %v1067, %v1055
    %vm1070 = vcmask 195584
    %v1071 = vsel %vm1070, %v1068, %v1061
    %v1072 = vsel %vm1070, %v1069, %v1063
    %v1073 = vld [vmem:[#allocation10] sm:$0xff]
    %v1074 = vld [vmem:[#allocation10 + $0x8] sm:$0xff]
    %v1075 = vld [vmem:[#allocation10 + $0x10] sm:$0xff]
    %v1076 = vld [vmem:[#allocation10 + $0x18] sm:$0xff]
    %v1077 = vld [vmem:[%s7] sm:$0x1]
    %v1079 = vlaneseq
    %v1080 = vshrl.u32 %v1079, 7
    %v1081 = vsub.s32 0, %v1080
    %v1082 = vrot.slane %v1077, %v1081
    %v1085 = vsel %vm160, %v1071, 0
    %v1088 = vsel %vm160, %v1072, 0
    %1090 = vmatprep.subr.mxu0 0.0
    %1091 = vmatpush1.msra.mxu0 %v1073
    %1092 = vmatprep.subr.mxu0 0.0
    %1093 = vmatpush1.msra.mxu0 %v1074
    %1094 = vmatprep.subr.mxu0 0.0
    %1095 = vmatpush1.msra.mxu0 %v1075
    %1096 = vmatprep.subr.mxu0 0.0
    %1097 = vmatpush1.msra.mxu0 %v1076
    %1098 = vmatprep.subr.mxu0 0.0
    %1099 = vmatpush1.msra.mxu0 0.0
    %1100 = vmatprep.subr.mxu0 0.0
    %1101 = vmatpush1.msra.mxu0 0.0
    %1102 = vmatprep.subr.mxu0 0.0
    %1103 = vmatpush1.msra.mxu0 0.0
    %1104 = vmatprep.subr.mxu0 0.0
    %1105 = vmatpush1.msra.mxu0 0.0
    %1106 = vmatprep.subr.mxu0 0.0
    %1107 = vmatpush1.msra.mxu0 0.0
    %1108 = vmatprep.subr.mxu0 0.0
    %1109 = vmatpush1.msra.mxu0 0.0
    %1110 = vmatprep.subr.mxu0 0.0
    %1111 = vmatpush1.msra.mxu0 0.0
    %1112 = vmatprep.subr.mxu0 0.0
    %1113 = vmatpush1.msra.mxu0 0.0
    %1114 = vmatprep.subr.mxu0 0.0
    %1115 = vmatpush1.msra.mxu0 0.0
    %1116 = vmatprep.subr.mxu0 0.0
    %1117 = vmatpush1.msra.mxu0 0.0
    %1118 = vmatprep.subr.mxu0 0.0
    %1119 = vmatpush1.msra.mxu0 0.0
    %1120 = vmatprep.subr.mxu0 0.0
    %1121 = vmatpush1.msra.mxu0 0.0
    %1122 = vmatprep.subr.mxu0 0.0
    %1123 = vmatpush1.msra.mxu0 0.0
    %1124 = vmatprep.subr.mxu0 0.0
    %1125 = vmatpush1.msra.mxu0 0.0
    %1126 = vmatprep.subr.mxu0 0.0
    %1127 = vmatpush1.msra.mxu0 0.0
    %1128 = vmatprep.subr.mxu0 0.0
    %1129 = vmatpush1.msra.mxu0 0.0
    %1130 = vmatprep.subr.mxu0 0.0
    %1131 = vmatpush1.msra.mxu0 0.0
    %1132 = vmatprep.subr.mxu0 0.0
    %1133 = vmatpush1.msra.mxu0 0.0
    %1134 = vmatprep.subr.mxu0 0.0
    %1135 = vmatpush1.msra.mxu0 0.0
    %1136 = vmatprep.subr.mxu0 0.0
    %1137 = vmatpush1.msra.mxu0 0.0
    %1138 = vmatprep.subr.mxu0 0.0
    %1139 = vmatpush1.msra.mxu0 0.0
    %1140 = vmatprep.subr.mxu0 0.0
    %1141 = vmatpush1.msra.mxu0 0.0
    %1142 = vmatprep.subr.mxu0 0.0
    %1143 = vmatpush1.msra.mxu0 0.0
    %1144 = vmatprep.subr.mxu0 0.0
    %1145 = vmatpush1.msra.mxu0 0.0
    %1146 = vmatprep.subr.mxu0 0.0
    %1147 = vmatpush1.msra.mxu0 0.0
    %1148 = vmatprep.subr.mxu0 0.0
    %1149 = vmatpush1.msra.mxu0 0.0
    %1150 = vmatprep.subr.mxu0 0.0
    %1151 = vmatpush1.msra.mxu0 0.0
    %1152 = vmatprep.subr.mxu0 0.0
    %1153 = vmatpush1.msra.mxu0 0.0
    %1154 = vmatprep.mubr.f32.mxu0 0.0
    %1155 = vmatmul.mubr.f32.gmra.mrb[0].mxu0 %v1085
    %v1156 = vpop.f32.mrb[0].mxu0
    %v1157 = vadd.f32 %v1082, %v1156
    %v1158 = vpop.f32.mrb[0].mxu0
    %1159 = vmatprep.mubr.f32.mxu0 0.0
    %1160 = vmatmul.mubr.f32.gmra.mrb[0].mxu0 %v1088
    %v1161 = vpop.f32.mrb[0].mxu0
    %v1162 = vadd.f32 %v1082, %v1161
    %v1163 = vpop.f32.mrb[0].mxu0
    %1164 = vdwg.mxu0
    %v1167 = vcombine.high %v1157, %v1157
    %v1169 = vunpack.c.l.s4 1983009808
    %v1170 = vunpack.c.0.s8 %v1169
    %v1171 = vlaneseq
    %v1172 = vshrl.u32 %v1171, 7
    %v1173 = vsub.s32 %v1170, %v1172
    %v1174 = vrot.slane %v1157, %v1173
    %v1176 = vunpack.c.l.s4 1983009808
    %v1177 = vunpack.c.0.s8 %v1176
    %v1178 = vlaneseq
    %v1179 = vshrl.u32 %v1178, 7
    %v1180 = vsub.s32 %v1177, %v1179
    %v1181 = vrot.slane %v1167, %v1180
    %v1182 = vcombine.high %v1174, %v1174
    %v1183 = vcombine.high %v1181, %v1181
    %v1184 = vcombine.high %v1162, %v1162
    %v1186 = vunpack.c.l.s4 1983009808
    %v1187 = vunpack.c.0.s8 %v1186
    %v1188 = vlaneseq
    %v1189 = vshrl.u32 %v1188, 7
    %v1190 = vsub.s32 %v1187, %v1189
    %v1191 = vrot.slane %v1162, %v1190
    %v1193 = vunpack.c.l.s4 1983009808
    %v1194 = vunpack.c.0.s8 %v1193
    %v1195 = vlaneseq
    %v1196 = vshrl.u32 %v1195, 7
    %v1197 = vsub.s32 %v1194, %v1196
    %v1198 = vrot.slane %v1184, %v1197
    %v1199 = vcombine.high %v1191, %v1191
    %v1200 = vcombine.high %v1198, %v1198
    %vm1209 = vcmask 254976
    %1210 = vst.msk [vmem:[#allocation11] sm:$0x3] %vm1209, %v1174
    %1211 = vst.msk [vmem:[#allocation11 + $0x2] sm:$0x3] %vm1209, %v1182
    %1212 = vst.msk [vmem:[#allocation11 + $0x4] sm:$0x3] %vm1209, %v1181
    %1213 = vst.msk [vmem:[#allocation11 + $0x6] sm:$0x3] %vm1209, %v1183
    %1214 = vst.msk [vmem:[#allocation11 + $0x8] sm:$0x3] %vm1209, %v1191
    %1215 = vst.msk [vmem:[#allocation11 + $0xa] sm:$0x3] %vm1209, %v1199
    %1216 = vst.msk [vmem:[#allocation11 + $0xc] sm:$0x3] %vm1209, %v1198
    %1217 = vst.msk [vmem:[#allocation11 + $0xe] sm:$0x3] %vm1209, %v1200
    %v1218 = vld [vmem:[#allocation7] sm:$0xff]
    %v1219 = vsel %vm605, %v686, 0.0
    %v1220 = vsel %vm605, %v688, 0.0
    %v1221 = vadd.f32 %v1219, %v1220
    %v1222 = vsel %vm605, %v690, 0.0
    %v1223 = vadd.f32 %v1221, %v1222
    %v1224 = vsel %vm605, %v692, 0.0
    %v1225 = vadd.f32 %v1223, %v1224
    %v1226 = vsel %vm605, %v687, 0.0
    %v1227 = vsel %vm605, %v689, 0.0
    %v1228 = vadd.f32 %v1226, %v1227
    %v1229 = vsel %vm605, %v691, 0.0
    %v1230 = vadd.f32 %v1228, %v1229
    %v1231 = vsel %vm605, %v693, 0.0
    %v1232 = vadd.f32 %v1230, %v1231
    %v1233 = vrcp.pop 4.0
    %v1234 = vmul.f32 %v1225, %v1233
    %v1235 = vmul.f32 %v1232, %v1233
    %v1236 = vsel %vm605, %v1234, 0.0
    %v1237 = vsel %vm605, %v1235, 0.0
    %v1238 = vadd.f32 %v1236, %v1237
    %v1239 = vrot.slane %v1238, 4
    %v1240 = vadd.f32 %v1238, %v1239
    %v1241 = vrot.slane %v1240, 2
    %v1242 = vadd.f32 %v1240, %v1241
    %v1243 = vrot.slane %v1242, 1
    %v1244 = vadd.f32 %v1242, %v1243
    %v1245 = vmul.f32 %v1244, %v1218
    %v1246 = vld [vmem:[%s3] sm:$0xff]
    %v1247 = vadd.f32 %v1245, %v1246
    %v1248 = vsel %vm605, %v1247, -inf
    %1249 = vmax.xlane.f32.xlu0 %v1248
    %v1250 = vpop.xlane.xlu0 %1249
    %v1251 = vsub.f32 %v1247, %v1250
    %v1252 = vmul.f32 %v1251, 1.442695
    %v1253 = vpow.pop %v1252
    %v1254 = vsel %vm605, %v1253, 0.0
    %1255 = vadd.xlane.f32.xlu0 %v1254
    %v1256 = vpop.xlane.xlu0 %1255
    %v1257 = vrcp.pop %v1256
    %v1258 = vmul.f32 %v1253, %v1257
    %v1259 = vmul.f32 %v1258, %v1218
    %v1260 = vsel %vm605, %v1259, 0.0
    %v1261 = vrot.slane %v1260, 4
    %v1262 = vadd.f32 %v1260, %v1261
    %v1263 = vrot.slane %v1262, 2
    %v1264 = vadd.f32 %v1262, %v1263
    %v1265 = vrot.slane %v1264, 1
    %v1266 = vadd.f32 %v1264, %v1265
    %v1267 = vsel %vm605, %v1266, 0.0
    %1268 = vst [vmem:[#allocation12] sm:$0x1] %v1267
    // Predicated region
    $region54: #{tpu_custom_call.1} parent=1 // pred_check
      _
    $region55: #{tpu_custom_call.1} parent=1 // pred_check_branch
      %1270 = sbr.rel (0) target = $region57
    $region56: #{tpu_custom_call.1} parent=1 // pred_region
      %s1272 = ssub.s32 256, 256
      %1273 = vsyncadd [#allocation4], %s1272
      %s1274 = sshll.u32 [#allocation11], 4
      %s1275 = int_to_ptr.vmem [resolvable:$true] %s1274
      %1280 = dma.vmem_to_hbm [thread:$0]  %s1275, 256, %s8, [#allocation4], 32, 32, 2
    $region57: #{tpu_custom_call.1} parent=1 // pred_fallthru
      _
    // Predicated region
    $region58: #{tpu_custom_call.1} parent=1 // pred_check
      _
    $region59: #{tpu_custom_call.1} parent=1 // pred_check_branch
      %1282 = sbr.rel (0) target = $region61
    $region60: #{tpu_custom_call.1} parent=1 // pred_region
      %s1284 = ssub.s32 16, 16
      %1285 = vsyncadd [#allocation13], %s1284
      %s1287 = sshll.u32 [#allocation12], 4
      %s1288 = int_to_ptr.vmem [resolvable:$true] %s1287
      %1290 = dma.vmem_to_hbm [thread:$0]  %s1288, 16, %s9, [#allocation13]
    $region61: #{tpu_custom_call.1} parent=1 // pred_fallthru
      _
    // Predicated region
    $region62: #{tpu_custom_call.1} parent=1 // pred_check
      _
    $region63: #{tpu_custom_call.1} parent=1 // pred_check_branch
      %1292 = sbr.rel (0) target = $region65
    $region64: #{tpu_custom_call.1} parent=1 // pred_region
      %1293 = dma.done [#allocation4], 256
    $region65: #{tpu_custom_call.1} parent=1 // pred_fallthru
      _
    // Predicated region
    $region66: #{tpu_custom_call.1} parent=1 // pred_check
      _
    $region67: #{tpu_custom_call.1} parent=1 // pred_check_branch
      %1295 = sbr.rel (0) target = $region69
    $region68: #{tpu_custom_call.1} parent=1 // pred_region
      %1296 = dma.done [#allocation13], 16
    $region69: #{tpu_custom_call.1} parent=1 // pred_fallthru
      _
    %1297 = vsyncpa [#allocation3], 1
    %1298 = vsyncpa [#allocation6], 1
    %1299 = vsyncpa [#allocation9], 1
    %1300 = vsyncpa [#allocation4], 1
    %1301 = vsyncpa [#allocation13], 1

</llo_original>
